<compile_context>
chip_gen: v7x
topology: tpu7x:2x2x1
jax: 0.10.0
libtpu: 0.0.40
codegen_flags: <defaults>
</compile_context>

<pallas_src>
from functools import partial

import numpy as np
import jax
import jax.numpy as jnp
from jax.experimental import pallas as pl
from jax.experimental.pallas import tpu as pltpu


_COMPUTE_DTYPE = jnp.bfloat16   # MXU operand dtype; accumulation / epilogue stay f32.

# ----------------------------------------------------------------------------
# pltpu.roll rotation-convention probe (cached; falls back to slice+concat)
# ----------------------------------------------------------------------------
_ROLL_MODE = None


def _roll_mode():
    """Return "jnp_like" if pltpu.roll matches jnp.roll, "inverse" if it rotates the
    other way, or "emulate" (slice+concat shift) if the probe cannot run."""
    global _ROLL_MODE
    if _ROLL_MODE is not None:
        return _ROLL_MODE
    try:
        def k(x_ref, o_ref):
            o_ref[...] = pltpu.roll(x_ref[...], 3, axis=1)

        x = np.arange(8 * 256, dtype=np.float32).reshape(8, 256)
        y = pl.pallas_call(
            k, out_shape=jax.ShapeDtypeStruct((8, 256), jnp.float32))(jnp.asarray(x))
        y = np.asarray(jax.block_until_ready(y))
        if np.array_equal(y, np.roll(x, 3, axis=1)):
            _ROLL_MODE = "jnp_like"
        elif np.array_equal(y, np.roll(x, -3, axis=1)):
            _ROLL_MODE = "inverse"
        else:
            _ROLL_MODE = "emulate"
    except Exception:  # e.g. called under tracing before being cached
        _ROLL_MODE = "emulate"
    return _ROLL_MODE


def _lane_shift(v, off, mode):
    """Return s with s[:, l] = v[:, (l + off) % L]; wrapped lanes are masked by the caller."""
    n = v.shape[-1]
    off = off % n
    if off == 0:
        return v
    if mode == "jnp_like":
        return pltpu.roll(v, n - off, axis=1)
    if mode == "inverse":
        return pltpu.roll(v, off, axis=1)
    return jnp.concatenate([v[:, off:], v[:, :off]], axis=1)


# ----------------------------------------------------------------------------
# Fused ConvBlock kernel (one image per grid step)
# ----------------------------------------------------------------------------
def _conv_block_kernel(*refs, off1, off2, off3, has_xt, res_conv, strided, roll_mode):
    it = iter(refs)
    x_ref = next(it)
    xt_ref = next(it) if has_xt else None
    w1_ref, b1_ref, m1_ref = next(it), next(it), next(it)
    w2_ref, b2_ref, m2_ref = next(it), next(it), next(it)
    w3_ref, b3_ref, m3_ref = next(it), next(it), next(it)
    wr_ref = br_ref = None
    if res_conv:
        wr_ref, br_ref = next(it), next(it)
    sel_ref = next(it) if strided else None
    out_ref, x2_ref = next(it), next(it)

    def conv(inp, w_ref, b_ref, m_ref, offs):
        # inp: (Cin, L) f32.  One K-packed MXU matmul on an in-VMEM im2col slab.
        masks = m_ref[...]                                       # (ntaps, L) f32, 0/1
        rows = [_lane_shift(inp, off, roll_mode) * masks[j:j + 1, :]
                for j, off in enumerate(offs)]
        slab = rows[0] if len(rows) == 1 else jnp.concatenate(rows, axis=0)
        acc = jnp.dot(w_ref[...], slab.astype(w_ref.dtype),      # bf16 x bf16 -> f32
                      preferred_element_type=jnp.float32)
        return acc + b_ref[...]                                  # folded-BN bias (f32)

    x_in = x_ref[0].astype(jnp.float32)                          # (Cin, L)

    # conv1 -> bn1 -> relu, with the optional `+ x_t` fused after the activation.
    x1 = jnp.maximum(conv(x_in, w1_ref, b1_ref, m1_ref, off1), 0.0)
    if has_xt:
        x1 = x1 + xt_ref[0].astype(jnp.float32)

    # conv2 -> bn2 -> relu, then the H/W stride as one selection matmul.
    x2 = jnp.maximum(conv(x1, w2_ref, b2_ref, m2_ref, off2), 0.0)
    if strided:
        x2 = jnp.dot(x2, sel_ref[...], preferred_element_type=jnp.float32)

    # conv3 -> bn3.
    y3 = conv(x2, w3_ref, b3_ref, m3_ref, off3)

    # Residual branch (1x1x1 conv + bn, or identity).
    if res_conv:
        xs = x_in
        if strided:
            xs = jnp.dot(xs, sel_ref[...], preferred_element_type=jnp.float32)
        res = jnp.dot(wr_ref[...].astype(jnp.float32), xs,
                      preferred_element_type=jnp.float32) + br_ref[...]
    else:
        res = x_in

    out = jnp.maximum(y3 + res, 0.0)
    out_ref[0] = out.astype(out_ref.dtype)
    x2_ref[0] = x2.astype(x2_ref.dtype)


# ----------------------------------------------------------------------------
# Wrapper helpers
# ----------------------------------------------------------------------------
def _round_up(n, m):
    return ((n + m - 1) // m) * m


def _taps(T, H, W, ksize, pad, l_pad):
    """Static tap lane-offsets + 0/1 validity masks (= the conv's zero padding)."""
    kt, kh, kw = ksize
    pt, ph, pw = pad
    hw = H * W
    l = np.arange(l_pad)
    wi = l % W
    hi = (l // W) % H
    ti = l // hw
    in_vol = l < T * hw
    offs, masks = [], []
    for dt in range(kt):
        for dh in range(kh):
            for dw in range(kw):
                offs.append((dt - pt) * hw + (dh - ph) * W + (dw - pw))
                tt, hh, ww = ti + dt - pt, hi + dh - ph, wi + dw - pw
                m = (in_vol & (tt >= 0) & (tt < T) & (hh >= 0) & (hh < H)
                     & (ww >= 0) & (ww < W))
                masks.append(m)
    return tuple(offs), jnp.asarray(np.stack(masks).astype(np.float32))


def _sel_matrix(T, H, W, stride, l_pad, lo_pad):
    """One-hot (l_pad, lo_pad) matrix selecting the H/W-strided output columns."""
    ho = (H - 1) // stride + 1
    wo = (W - 1) // stride + 1
    lo = T * ho * wo
    j = np.arange(lo_pad)
    t = j // (ho * wo)
    r = j % (ho * wo)
    src = t * H * W + (r // wo) * stride * W + (r % wo) * stride
    sel = (np.arange(l_pad)[:, None] == src[None, :]) & (j[None, :] < lo)
    return jnp.asarray(sel.astype(np.float32))


def _pack_w(w, scale, dtype):
    """Fold the BN scale into the conv weight and pack taps into the K dimension."""
    co, ci, kt, kh, kw = w.shape
    wp = (w * scale.reshape(co, 1, 1, 1, 1)).reshape(co, ci, kt * kh * kw)
    return wp.transpose(0, 2, 1).reshape(co, kt * kh * kw * ci).astype(dtype)


def bn_fold(gamma, beta, mean, var, eps=1e-6):
    # Inference-mode BatchNorm3d folded into a per-channel affine (eps=1e-6 per module).
    s = gamma / jnp.sqrt(var + eps)
    return s.astype(jnp.float32), (beta - mean * s).astype(jnp.float32)


# ----------------------------------------------------------------------------
# ConvBlock forward (fused Pallas path)
# ----------------------------------------------------------------------------
def conv_block_fwd(x, p, x_t=None, return_x_2=True, *, stride=1, res_conv=False,
                   inflate=(3, 1, 3), inflate_pad=(1, 0, 1)):
    """Fused Pallas forward of ConvBlock (eval mode: BN folded, no drop layers)."""
    N, cin, T, H, W = x.shape
    med = p["w1"].shape[0]
    outp = p["w3"].shape[0]
    for k, pad in zip(inflate, inflate_pad):
        assert k == 2 * pad + 1, "temporal convs must be 'same' (k == 2*pad + 1)"
    if not res_conv:
        assert stride == 1 and cin == outp, "identity residual needs matching shapes"

    ho = (H - 1) // stride + 1
    wo = (W - 1) // stride + 1
    L = T * H * W
    Lo = T * ho * wo
    Lp = _round_up(L, 128)                      # lane-dense stores / loads
    Lop = Lp if stride == 1 else _round_up(Lo, 128)
    cdt = _COMPUTE_DTYPE
    roll_mode = _roll_mode()

    def flat(a):
        c = a.shape[1]
        a = a.reshape(N, c, L)
        if Lp != L:
            a = jnp.pad(a, ((0, 0), (0, 0), (0, Lp - L)))
        return a.astype(cdt)

    args = [flat(x)]
    in_specs = [pl.BlockSpec((1, cin, Lp), lambda b: (b, 0, 0))]
    has_xt = x_t is not None
    if has_xt:
        args.append(flat(x_t))
        in_specs.append(pl.BlockSpec((1, med, Lp), lambda b: (b, 0, 0)))

    def bcast(a):
        args.append(a)
        in_specs.append(pl.BlockSpec(a.shape, lambda b: (0, 0)))

    s1, b1 = p["bn1"]
    s2, b2 = p["bn2"]
    s3, b3 = p["bn3"]
    off1, m1 = _taps(T, H, W, (inflate[0], 1, 1), (inflate_pad[0], 0, 0), Lp)
    off2, m2 = _taps(T, H, W, (inflate[1], 3, 3), (inflate_pad[1], 1, 1), Lp)
    off3, m3 = _taps(T, ho, wo, (inflate[2], 1, 1), (inflate_pad[2], 0, 0), Lop)

    bcast(_pack_w(p["w1"], s1, cdt))
    bcast(b1.reshape(med, 1).astype(jnp.float32))
    bcast(m1)
    bcast(_pack_w(p["w2"], s2, cdt))
    bcast(b2.reshape(med, 1).astype(jnp.float32))
    bcast(m2)
    bcast(_pack_w(p["w3"], s3, cdt))
    bcast(b3.reshape(outp, 1).astype(jnp.float32))
    bcast(m3)
    if res_conv:
        sr, br = p["bnres"]
        bcast((p["wres"].reshape(outp, cin) * sr.reshape(outp, 1)).astype(cdt))
        bcast(br.reshape(outp, 1).astype(jnp.float32))
    strided = stride > 1
    if strided:
        bcast(_sel_matrix(T, H, W, stride, Lp, Lop))

    kernel = partial(_conv_block_kernel, off1=off1, off2=off2, off3=off3,
                     has_xt=has_xt, res_conv=res_conv, strided=strided,
                     roll_mode=roll_mode)

    out_flat, x2_flat = pl.pallas_call(
        kernel,
        out_shape=(jax.ShapeDtypeStruct((N, outp, Lop), x.dtype),
                   jax.ShapeDtypeStruct((N, med, Lop), x.dtype)),
        grid=(N,),
        in_specs=in_specs,
        out_specs=(pl.BlockSpec((1, outp, Lop), lambda b: (b, 0, 0)),
                   pl.BlockSpec((1, med, Lop), lambda b: (b, 0, 0))),
        compiler_params=pltpu.CompilerParams(
            dimension_semantics=("parallel",),
            # Above the 32 MiB scoped default, below v7x's 64 MiB physical VMEM.
            vmem_limit_bytes=48 * 1024 * 1024),
    )(*args)

    out = out_flat[:, :, :Lo].reshape(N, outp, T, ho, wo)
    if not return_x_2:
        return out
    x2 = x2_flat[:, :, :Lo].reshape(N, med, T, ho, wo)
    return out, x2


# ----------------------------------------------------------------------------
# Pure-JAX reference (for numerical verification)
# ----------------------------------------------------------------------------
def _conv_block_ref(x, p, x_t=None, return_x_2=True, *, stride=1, res_conv=False,
                    inflate=(3, 1, 3), inflate_pad=(1, 0, 1)):
    def conv(h, w, s_hw, pad):
        return jax.lax.conv_general_dilated(
            h, w, window_strides=(1, s_hw, s_hw),
            padding=[(pad[0], pad[0]), (pad[1], pad[1]), (pad[2], pad[2])],
            dimension_numbers=("NCDHW", "OIDHW", "NCDHW"),
            precision=jax.lax.Precision.HIGHEST)

    def bn(h, sb):
        s, b = sb
        return h * s[None, :, None, None, None] + b[None, :, None, None, None]

    residual = x
    h = jax.nn.relu(bn(conv(x, p["w1"], 1, (inflate_pad[0], 0, 0)), p["bn1"]))
    if x_t is not None:
        h = h + x_t
    h2 = jax.nn.relu(bn(conv(h, p["w2"], stride, (inflate_pad[1], 1, 1)), p["bn2"]))
    h3 = bn(conv(h2, p["w3"], 1, (inflate_pad[2], 0, 0)), p["bn3"])
    if res_conv:
        residual = bn(conv(x, p["wres"], stride, (0, 0, 0)), p["bnres"])
    out = jax.nn.relu(h3 + residual)
    return (out, h2) if return_x_2 else out


# ----------------------------------------------------------------------------
# Deterministic parameter initialisation
# ----------------------------------------------------------------------------
def _conv_w(k, cout, cin, kt, kh, kw):
    return jax.random.normal(k, (cout, cin, kt, kh, kw), jnp.float32) * 0.1


def _bn_params(k, c):
    k1, k2, k3, k4 = jax.random.split(k, 4)
    gamma = jax.random.uniform(k1, (c,), minval=0.5, maxval=1.5)
    beta = jax.random.normal(k2, (c,)) * 0.1
    mean = jax.random.normal(k3, (c,)) * 0.1
    var = jax.random.uniform(k4, (c,), minval=0.5, maxval=1.5)
    return bn_fold(gamma, beta, mean, var, eps=1e-6)


def init_conv_block_params(key, inplanes, outplanes, res_conv, inflate):
    med = outplanes // 4
    ks = jax.random.split(key, 8)
    p = {
        "w1": _conv_w(ks[0], med, inplanes, inflate[0], 1, 1),
        "bn1": _bn_params(ks[1], med),
        "w2": _conv_w(ks[2], med, med, inflate[1], 3, 3),
        "bn2": _bn_params(ks[3], med),
        "w3": _conv_w(ks[4], outplanes, med, inflate[2], 1, 1),
        "bn3": _bn_params(ks[5], outplanes),
    }
    if res_conv:
        p["wres"] = _conv_w(ks[6], outplanes, inplanes, 1, 1, 1)
        p["bnres"] = _bn_params(ks[7], outplanes)
    return p


# ----------------------------------------------------------------------------
if __name__ == "__main__":
    _roll_mode()  # resolve pltpu.roll's rotation convention eagerly (outside jit)

    key = jax.random.PRNGKey(0)
    B, T, H, W = 2, 4, 8, 8
    inplanes, outplanes = 8, 16
    med = outplanes // 4
    inflate, inflate_pad = (3, 1, 3), (1, 0, 1)

    ks = jax.random.split(key, 3)
    params = init_conv_block_params(ks[0], inplanes, outplanes, True, inflate)
    x = jax.random.normal(ks[1], (B, inplanes, T, H, W), jnp.float32)
    x_t = jax.random.normal(ks[2], (B, med, T, H, W), jnp.float32)

    # Case 1: stride=1, res_conv=True, with x_t, return_x_2=True.
    fwd = jax.jit(lambda a, pp, at: conv_block_fwd(
        a, pp, at, True, stride=1, res_conv=True,
        inflate=inflate, inflate_pad=inflate_pad))
    out, x2 = fwd(x, params, x_t)
    jax.block_until_ready((out, x2))
    assert out.shape == (B, outplanes, T, H, W)
    assert x2.shape == (B, med, T, H, W)

    out_ref, x2_ref = _conv_block_ref(x, params, x_t, True, stride=1, res_conv=True,
                                      inflate=inflate, inflate_pad=inflate_pad)
    err = max(float(jnp.max(jnp.abs(out - out_ref))),
              float(jnp.max(jnp.abs(x2 - x2_ref))))
    # bf16 MXU operands (f32 accumulation / epilogue) across three chained convs
    # give ~1e-2 absolute error against the f32 reference at these magnitudes.
    assert err < 6e-2, f"mismatch vs reference: {err}"

    # Case 2: stride=2 downsampling block, no x_t, return_x_2=False.
    fwd_s = jax.jit(lambda a, pp: conv_block_fwd(
        a, pp, None, False, stride=2, res_conv=True,
        inflate=inflate, inflate_pad=inflate_pad))
    out_s = fwd_s(x, params)
    jax.block_until_ready(out_s)
    assert out_s.shape == (B, outplanes, T, H // 2, W // 2)
    out_s_ref = _conv_block_ref(x, params, None, False, stride=2, res_conv=True,
                                inflate=inflate, inflate_pad=inflate_pad)
    err_s = float(jnp.max(jnp.abs(out_s - out_s_ref)))
    assert err_s < 6e-2, f"strided mismatch vs reference: {err_s}"

    print("KERNEL_OK")
</pallas_src>

<mosaic_0001>
module attributes {stable_mosaic.version = 11 : i64} {
  func.func @k(%arg0: memref<8x256xf32, #tpu.memory_space<vmem>>, %arg1: memref<8x256xf32, #tpu.memory_space<vmem>>) attributes {dimension_semantics = [], scalar_prefetch = 0 : i64, scratch_operands = 0 : i64, tpu.core_type = #tpu.core_type<tc>} {
    %c0 = arith.constant 0 : index
    %c0_0 = arith.constant 0 : index
    %0 = vector.load %arg0[%c0, %c0_0] : memref<8x256xf32, #tpu.memory_space<vmem>>, vector<8x256xf32>
    %c3_i32 = arith.constant 3 : i32
    %1 = tpu.dynamic_rotate %0 by %c3_i32 dim 1 : vector<8x256xf32>, i32 -> vector<8x256xf32>
    %c0_1 = arith.constant 0 : index
    %c0_2 = arith.constant 0 : index
    %2 = vector.load %arg1[%c0_1, %c0_2] : memref<8x256xf32, #tpu.memory_space<vmem>>, vector<8x256xf32>
    tpu.vector_store %arg1[%c0_1, %c0_2], %1 {strides = array<i32>} : memref<8x256xf32, #tpu.memory_space<vmem>>, vector<8x256xf32>,
    return
  }
}

module attributes {stable_mosaic.version = 11 : i64} {
  func.func @_conv_block_kernel(%arg0: i32, %arg1: memref<1x8x256xbf16, #tpu.memory_space<vmem>>, %arg2: memref<1x4x256xbf16, #tpu.memory_space<vmem>>, %arg3: memref<4x24xbf16, #tpu.memory_space<vmem>>, %arg4: memref<4x1xf32, #tpu.memory_space<vmem>>, %arg5: memref<3x256xf32, #tpu.memory_space<vmem>>, %arg6: memref<4x36xbf16, #tpu.memory_space<vmem>>, %arg7: memref<4x1xf32, #tpu.memory_space<vmem>>, %arg8: memref<9x256xf32, #tpu.memory_space<vmem>>, %arg9: memref<16x12xbf16, #tpu.memory_space<vmem>>, %arg10: memref<16x1xf32, #tpu.memory_space<vmem>>, %arg11: memref<3x256xf32, #tpu.memory_space<vmem>>, %arg12: memref<16x8xbf16, #tpu.memory_space<vmem>>, %arg13: memref<16x1xf32, #tpu.memory_space<vmem>>, %arg14: memref<1x16x256xf32, #tpu.memory_space<vmem>>, %arg15: memref<1x4x256xf32, #tpu.memory_space<vmem>>) attributes {dimension_semantics = [#tpu.dimension_semantics<parallel>], iteration_bounds = array<i64: 2>, scalar_prefetch = 0 : i64, scratch_operands = 0 : i64, tpu.core_type = #tpu.core_type<tc>, window_params = [{transform_indices = @transform_0, window_bounds = array<i64: 1, 8, 256>}, {transform_indices = @transform_1, window_bounds = array<i64: 1, 4, 256>}, {pipeline_mode = #tpu.pipeline_mode<synchronous>, transform_indices = @transform_2, window_bounds = array<i64: 4, 24>}, {pipeline_mode = #tpu.pipeline_mode<synchronous>, transform_indices = @transform_3, window_bounds = array<i64: 4, 1>}, {pipeline_mode = #tpu.pipeline_mode<synchronous>, transform_indices = @transform_4, window_bounds = array<i64: 3, 256>}, {pipeline_mode = #tpu.pipeline_mode<synchronous>, transform_indices = @transform_5, window_bounds = array<i64: 4, 36>}, {pipeline_mode = #tpu.pipeline_mode<synchronous>, transform_indices = @transform_6, window_bounds = array<i64: 4, 1>}, {pipeline_mode = #tpu.pipeline_mode<synchronous>, transform_indices = @transform_7, window_bounds = array<i64: 9, 256>}, {pipeline_mode = #tpu.pipeline_mode<synchronous>, transform_indices = @transform_8, window_bounds = array<i64: 16, 12>}, {pipeline_mode = #tpu.pipeline_mode<synchronous>, transform_indices = @transform_9, window_bounds = array<i64: 16, 1>}, {pipeline_mode = #tpu.pipeline_mode<synchronous>, transform_indices = @transform_10, window_bounds = array<i64: 3, 256>}, {pipeline_mode = #tpu.pipeline_mode<synchronous>, transform_indices = @transform_11, window_bounds = array<i64: 16, 8>}, {pipeline_mode = #tpu.pipeline_mode<synchronous>, transform_indices = @transform_12, window_bounds = array<i64: 16, 1>}, {transform_indices = @transform_13, window_bounds = array<i64: 1, 16, 256>}, {transform_indices = @transform_14, window_bounds = array<i64: 1, 4, 256>}]} {
    %c0 = arith.constant 0 : index
    %c0_0 = arith.constant 0 : index
    %c0_1 = arith.constant 0 : index
    %0 = vector.load %arg1[%c0, %c0_0, %c0_1] : memref<1x8x256xbf16, #tpu.memory_space<vmem>>, vector<1x8x256xbf16>
    %1 = vector.shape_cast %0 : vector<1x8x256xbf16> to vector<8x256xbf16>
    %2 = arith.extf %1 : vector<8x256xbf16> to vector<8x256xf32>
    %c0_2 = arith.constant 0 : index
    %c0_3 = arith.constant 0 : index
    %3 = vector.load %arg5[%c0_2, %c0_3] : memref<3x256xf32, #tpu.memory_space<vmem>>, vector<3x256xf32>
    %4 = vector.extract_strided_slice %2 {offsets = [0, 192], sizes = [8, 64], strides = [1, 1]} : vector<8x256xf32> to vector<8x64xf32>
    %5 = vector.extract_strided_slice %2 {offsets = [0, 0], sizes = [8, 192], strides = [1, 1]} : vector<8x256xf32> to vector<8x192xf32>
    %6 = tpu.concatenate %4, %5 in 1 : vector<8x64xf32>, vector<8x192xf32> -> vector<8x256xf32>
    %7 = vector.extract_strided_slice %3 {offsets = [0, 0], sizes = [1, 256], strides = [1, 1]} : vector<3x256xf32> to vector<1x256xf32>
    %8 = vector.broadcast %7 : vector<1x256xf32> to vector<8x256xf32>
    %9 = arith.mulf %6, %8 : vector<8x256xf32>
    %10 = vector.extract_strided_slice %3 {offsets = [1, 0], sizes = [1, 256], strides = [1, 1]} : vector<3x256xf32> to vector<1x256xf32>
    %11 = vector.broadcast %10 : vector<1x256xf32> to vector<8x256xf32>
    %12 = arith.mulf %2, %11 : vector<8x256xf32>
    %13 = vector.extract_strided_slice %2 {offsets = [0, 64], sizes = [8, 192], strides = [1, 1]} : vector<8x256xf32> to vector<8x192xf32>
    %14 = vector.extract_strided_slice %2 {offsets = [0, 0], sizes = [8, 64], strides = [1, 1]} : vector<8x256xf32> to vector<8x64xf32>
    %15 = tpu.concatenate %13, %14 in 1 : vector<8x192xf32>, vector<8x64xf32> -> vector<8x256xf32>
    %16 = vector.extract_strided_slice %3 {offsets = [2, 0], sizes = [1, 256], strides = [1, 1]} : vector<3x256xf32> to vector<1x256xf32>
    %17 = vector.broadcast %16 : vector<1x256xf32> to vector<8x256xf32>
    %18 = arith.mulf %15, %17 : vector<8x256xf32>
    %19 = tpu.concatenate %9, %12, %18 in 0 : vector<8x256xf32>, vector<8x256xf32>, vector<8x256xf32> -> vector<24x256xf32>
    %c0_4 = arith.constant 0 : index
    %c0_5 = arith.constant 0 : index
    %20 = vector.load %arg3[%c0_4, %c0_5] : memref<4x24xbf16, #tpu.memory_space<vmem>>, vector<4x24xbf16>
    %21 = arith.truncf %19 : vector<24x256xf32> to vector<24x256xbf16>
    %cst = arith.constant dense<0.000000e+00> : vector<4x256xf32>
    %22 = tpu.matmul %20, %21, %cst {dimension_numbers = #tpu.dot_dimension_numbers<[1], [0], [0], [1], [0, 0, 1, 1], [], []>} : vector<4x24xbf16>, vector<24x256xbf16>, vector<4x256xf32> -> vector<4x256xf32>
    %c0_6 = arith.constant 0 : index
    %c0_7 = arith.constant 0 : index
    %23 = vector.load %arg4[%c0_6, %c0_7] : memref<4x1xf32, #tpu.memory_space<vmem>>, vector<4x1xf32>
    %24 = vector.broadcast %23 : vector<4x1xf32> to vector<4x256xf32>
    %25 = arith.addf %22, %24 : vector<4x256xf32>
    %cst_8 = arith.constant 0.000000e+00 : f32
    %26 = vector.broadcast %cst_8 : f32 to vector<4x256xf32>
    %27 = arith.maximumf %25, %26 : vector<4x256xf32>
    %c0_9 = arith.constant 0 : index
    %c0_10 = arith.constant 0 : index
    %c0_11 = arith.constant 0 : index
    %28 = vector.load %arg2[%c0_9, %c0_10, %c0_11] : memref<1x4x256xbf16, #tpu.memory_space<vmem>>, vector<1x4x256xbf16>
    %29 = vector.shape_cast %28 : vector<1x4x256xbf16> to vector<4x256xbf16>
    %30 = arith.extf %29 : vector<4x256xbf16> to vector<4x256xf32>
    %31 = arith.addf %27, %30 : vector<4x256xf32>
    %c0_12 = arith.constant 0 : index
    %c0_13 = arith.constant 0 : index
    %32 = vector.load %arg8[%c0_12, %c0_13] : memref<9x256xf32, #tpu.memory_space<vmem>>, vector<9x256xf32>
    %33 = vector.extract_strided_slice %31 {offsets = [0, 247], sizes = [4, 9], strides = [1, 1]} : vector<4x256xf32> to vector<4x9xf32>
    %34 = vector.extract_strided_slice %31 {offsets = [0, 0], sizes = [4, 247], strides = [1, 1]} : vector<4x256xf32> to vector<4x247xf32>
    %35 = tpu.concatenate %33, %34 in 1 : vector<4x9xf32>, vector<4x247xf32> -> vector<4x256xf32>
    %36 = vector.extract_strided_slice %32 {offsets = [0, 0], sizes = [1, 256], strides = [1, 1]} : vector<9x256xf32> to vector<1x256xf32>
    %37 = vector.broadcast %36 : vector<1x256xf32> to vector<4x256xf32>
    %38 = arith.mulf %35, %37 : vector<4x256xf32>
    %39 = vector.extract_strided_slice %31 {offsets = [0, 248], sizes = [4, 8], strides = [1, 1]} : vector<4x256xf32> to vector<4x8xf32>
    %40 = vector.extract_strided_slice %31 {offsets = [0, 0], sizes = [4, 248], strides = [1, 1]} : vector<4x256xf32> to vector<4x248xf32>
    %41 = tpu.concatenate %39, %40 in 1 : vector<4x8xf32>, vector<4x248xf32> -> vector<4x256xf32>
    %42 = vector.extract_strided_slice %32 {offsets = [1, 0], sizes = [1, 256], strides = [1, 1]} : vector<9x256xf32> to vector<1x256xf32>
    %43 = vector.broadcast %42 : vector<1x256xf32> to vector<4x256xf32>
    %44 = arith.mulf %41, %43 : vector<4x256xf32>
    %45 = vector.extract_strided_slice %31 {offsets = [0, 249], sizes = [4, 7], strides = [1, 1]} : vector<4x256xf32> to vector<4x7xf32>
    %46 = vector.extract_strided_slice %31 {offsets = [0, 0], sizes = [4, 249], strides = [1, 1]} : vector<4x256xf32> to vector<4x249xf32>
    %47 = tpu.concatenate %45, %46 in 1 : vector<4x7xf32>, vector<4x249xf32> -> vector<4x256xf32>
    %48 = vector.extract_strided_slice %32 {offsets = [2, 0], sizes = [1, 256], strides = [1, 1]} : vector<9x256xf32> to vector<1x256xf32>
    %49 = vector.broadcast %48 : vector<1x256xf32> to vector<4x256xf32>
    %50 = arith.mulf %47, %49 : vector<4x256xf32>
    %51 = vector.extract_strided_slice %31 {offsets = [0, 255], sizes = [4, 1], strides = [1, 1]} : vector<4x256xf32> to vector<4x1xf32>
    %52 = vector.extract_strided_slice %31 {offsets = [0, 0], sizes = [4, 255], strides = [1, 1]} : vector<4x256xf32> to vector<4x255xf32>
    %53 = tpu.concatenate %51, %52 in 1 : vector<4x1xf32>, vector<4x255xf32> -> vector<4x256xf32>
    %54 = vector.extract_strided_slice %32 {offsets = [3, 0], sizes = [1, 256], strides = [1, 1]} : vector<9x256xf32> to vector<1x256xf32>
    %55 = vector.broadcast %54 : vector<1x256xf32> to vector<4x256xf32>
    %56 = arith.mulf %53, %55 : vector<4x256xf32>
    %57 = vector.extract_strided_slice %32 {offsets = [4, 0], sizes = [1, 256], strides = [1, 1]} : vector<9x256xf32> to vector<1x256xf32>
    %58 = vector.broadcast %57 : vector<1x256xf32> to vector<4x256xf32>
    %59 = arith.mulf %31, %58 : vector<4x256xf32>
    %60 = vector.extract_strided_slice %31 {offsets = [0, 1], sizes = [4, 255], strides = [1, 1]} : vector<4x256xf32> to vector<4x255xf32>
    %61 = vector.extract_strided_slice %31 {offsets = [0, 0], sizes = [4, 1], strides = [1, 1]} : vector<4x256xf32> to vector<4x1xf32>
    %62 = tpu.concatenate %60, %61 in 1 : vector<4x255xf32>, vector<4x1xf32> -> vector<4x256xf32>
    %63 = vector.extract_strided_slice %32 {offsets = [5, 0], sizes = [1, 256], strides = [1, 1]} : vector<9x256xf32> to vector<1x256xf32>
    %64 = vector.broadcast %63 : vector<1x256xf32> to vector<4x256xf32>
    %65 = arith.mulf %62, %64 : vector<4x256xf32>
    %66 = vector.extract_strided_slice %31 {offsets = [0, 7], sizes = [4, 249], strides = [1, 1]} : vector<4x256xf32> to vector<4x249xf32>
    %67 = vector.extract_strided_slice %31 {offsets = [0, 0], sizes = [4, 7], strides = [1, 1]} : vector<4x256xf32> to vector<4x7xf32>
    %68 = tpu.concatenate %66, %67 in 1 : vector<4x249xf32>, vector<4x7xf32> -> vector<4x256xf32>
    %69 = vector.extract_strided_slice %32 {offsets = [6, 0], sizes = [1, 256], strides = [1, 1]} : vector<9x256xf32> to vector<1x256xf32>
    %70 = vector.broadcast %69 : vector<1x256xf32> to vector<4x256xf32>
    %71 = arith.mulf %68, %70 : vector<4x256xf32>
    %72 = vector.extract_strided_slice %31 {offsets = [0, 8], sizes = [4, 248], strides = [1, 1]} : vector<4x256xf32> to vector<4x248xf32>
    %73 = vector.extract_strided_slice %31 {offsets = [0, 0], sizes = [4, 8], strides = [1, 1]} : vector<4x256xf32> to vector<4x8xf32>
    %74 = tpu.concatenate %72, %73 in 1 : vector<4x248xf32>, vector<4x8xf32> -> vector<4x256xf32>
    %75 = vector.extract_strided_slice %32 {offsets = [7, 0], sizes = [1, 256], strides = [1, 1]} : vector<9x256xf32> to vector<1x256xf32>
    %76 = vector.broadcast %75 : vector<1x256xf32> to vector<4x256xf32>
    %77 = arith.mulf %74, %76 : vector<4x256xf32>
    %78 = vector.extract_strided_slice %31 {offsets = [0, 9], sizes = [4, 247], strides = [1, 1]} : vector<4x256xf32> to vector<4x247xf32>
    %79 = vector.extract_strided_slice %31 {offsets = [0, 0], sizes = [4, 9], strides = [1, 1]} : vector<4x256xf32> to vector<4x9xf32>
    %80 = tpu.concatenate %78, %79 in 1 : vector<4x247xf32>, vector<4x9xf32> -> vector<4x256xf32>
    %81 = vector.extract_strided_slice %32 {offsets = [8, 0], sizes = [1, 256], strides = [1, 1]} : vector<9x256xf32> to vector<1x256xf32>
    %82 = vector.broadcast %81 : vector<1x256xf32> to vector<4x256xf32>
    %83 = arith.mulf %80, %82 : vector<4x256xf32>
    %84 = tpu.concatenate %38, %44, %50, %56, %59, %65, %71, %77, %83 in 0 : vector<4x256xf32>, vector<4x256xf32>, vector<4x256xf32>, vector<4x256xf32>, vector<4x256xf32>, vector<4x256xf32>, vector<4x256xf32>, vector<4x256xf32>, vector<4x256xf32> -> vector<36x256xf32>
    %c0_14 = arith.constant 0 : index
    %c0_15 = arith.constant 0 : index
    %85 = vector.load %arg6[%c0_14, %c0_15] : memref<4x36xbf16, #tpu.memory_space<vmem>>, vector<4x36xbf16>
    %86 = arith.truncf %84 : vector<36x256xf32> to vector<36x256xbf16>
    %cst_16 = arith.constant dense<0.000000e+00> : vector<4x256xf32>
    %87 = tpu.matmul %85, %86, %cst_16 {dimension_numbers = #tpu.dot_dimension_numbers<[1], [0], [0], [1], [0, 0, 1, 1], [], []>} : vector<4x36xbf16>, vector<36x256xbf16>, vector<4x256xf32> -> vector<4x256xf32>
    %c0_17 = arith.constant 0 : index
    %c0_18 = arith.constant 0 : index
    %88 = vector.load %arg7[%c0_17, %c0_18] : memref<4x1xf32, #tpu.memory_space<vmem>>, vector<4x1xf32>
    %89 = vector.broadcast %88 : vector<4x1xf32> to vector<4x256xf32>
    %90 = arith.addf %87, %89 : vector<4x256xf32>
    %cst_19 = arith.constant 0.000000e+00 : f32
    %91 = vector.broadcast %cst_19 : f32 to vector<4x256xf32>
    %92 = arith.maximumf %90, %91 : vector<4x256xf32>
    %c0_20 = arith.constant 0 : index
    %c0_21 = arith.constant 0 : index
    %93 = vector.load %arg11[%c0_20, %c0_21] : memref<3x256xf32, #tpu.memory_space<vmem>>, vector<3x256xf32>
    %94 = vector.extract_strided_slice %92 {offsets = [0, 192], sizes = [4, 64], strides = [1, 1]} : vector<4x256xf32> to vector<4x64xf32>
    %95 = vector.extract_strided_slice %92 {offsets = [0, 0], sizes = [4, 192], strides = [1, 1]} : vector<4x256xf32> to vector<4x192xf32>
    %96 = tpu.concatenate %94, %95 in 1 : vector<4x64xf32>, vector<4x192xf32> -> vector<4x256xf32>
    %97 = vector.extract_strided_slice %93 {offsets = [0, 0], sizes = [1, 256], strides = [1, 1]} : vector<3x256xf32> to vector<1x256xf32>
    %98 = vector.broadcast %97 : vector<1x256xf32> to vector<4x256xf32>
    %99 = arith.mulf %96, %98 : vector<4x256xf32>
    %100 = vector.extract_strided_slice %93 {offsets = [1, 0], sizes = [1, 256], strides = [1, 1]} : vector<3x256xf32> to vector<1x256xf32>
    %101 = vector.broadcast %100 : vector<1x256xf32> to vector<4x256xf32>
    %102 = arith.mulf %92, %101 : vector<4x256xf32>
    %103 = vector.extract_strided_slice %92 {offsets = [0, 64], sizes = [4, 192], strides = [1, 1]} : vector<4x256xf32> to vector<4x192xf32>
    %104 = vector.extract_strided_slice %92 {offsets = [0, 0], sizes = [4, 64], strides = [1, 1]} : vector<4x256xf32> to vector<4x64xf32>
    %105 = tpu.concatenate %103, %104 in 1 : vector<4x192xf32>, vector<4x64xf32> -> vector<4x256xf32>
    %106 = vector.extract_strided_slice %93 {offsets = [2, 0], sizes = [1, 256], strides = [1, 1]} : vector<3x256xf32> to vector<1x256xf32>
    %107 = vector.broadcast %106 : vector<1x256xf32> to vector<4x256xf32>
    %108 = arith.mulf %105, %107 : vector<4x256xf32>
    %109 = tpu.concatenate %99, %102, %108 in 0 : vector<4x256xf32>, vector<4x256xf32>, vector<4x256xf32> -> vector<12x256xf32>
    %c0_22 = arith.constant 0 : index
    %c0_23 = arith.constant 0 : index
    %110 = vector.load %arg9[%c0_22, %c0_23] : memref<16x12xbf16, #tpu.memory_space<vmem>>, vector<16x12xbf16>
    %111 = arith.truncf %109 : vector<12x256xf32> to vector<12x256xbf16>
    %cst_24 = arith.constant dense<0.000000e+00> : vector<16x256xf32>
    %112 = tpu.matmul %110, %111, %cst_24 {dimension_numbers = #tpu.dot_dimension_numbers<[1], [0], [0], [1], [0, 0, 1, 1], [], []>} : vector<16x12xbf16>, vector<12x256xbf16>, vector<16x256xf32> -> vector<16x256xf32>
    %c0_25 = arith.constant 0 : index
    %c0_26 = arith.constant 0 : index
    %113 = vector.load %arg10[%c0_25, %c0_26] : memref<16x1xf32, #tpu.memory_space<vmem>>, vector<16x1xf32>
    %114 = vector.broadcast %113 : vector<16x1xf32> to vector<16x256xf32>
    %115 = arith.addf %112, %114 : vector<16x256xf32>
    %c0_27 = arith.constant 0 : index
    %c0_28 = arith.constant 0 : index
    %116 = vector.load %arg12[%c0_27, %c0_28] : memref<16x8xbf16, #tpu.memory_space<vmem>>, vector<16x8xbf16>
    %117 = arith.extf %116 : vector<16x8xbf16> to vector<16x8xf32>
    %cst_29 = arith.constant dense<0.000000e+00> : vector<16x256xf32>
    %118 = tpu.matmul %117, %2, %cst_29 {dimension_numbers = #tpu.dot_dimension_numbers<[1], [0], [0], [1], [0, 0, 1, 1], [], []>} : vector<16x8xf32>, vector<8x256xf32>, vector<16x256xf32> -> vector<16x256xf32>
    %c0_30 = arith.constant 0 : index
    %c0_31 = arith.constant 0 : index
    %119 = vector.load %arg13[%c0_30, %c0_31] : memref<16x1xf32, #tpu.memory_space<vmem>>, vector<16x1xf32>
    %120 = vector.broadcast %119 : vector<16x1xf32> to vector<16x256xf32>
    %121 = arith.addf %118, %120 : vector<16x256xf32>
    %122 = arith.addf %115, %121 : vector<16x256xf32>
    %cst_32 = arith.constant 0.000000e+00 : f32
    %123 = vector.broadcast %cst_32 : f32 to vector<16x256xf32>
    %124 = arith.maximumf %122, %123 : vector<16x256xf32>
    %c0_33 = arith.constant 0 : index
    %c0_34 = arith.constant 0 : index
    %c0_35 = arith.constant 0 : index
    %125 = vector.load %arg14[%c0_33, %c0_34, %c0_35] : memref<1x16x256xf32, #tpu.memory_space<vmem>>, vector<1x16x256xf32>
    %126 = vector.shape_cast %125 : vector<1x16x256xf32> to vector<16x256xf32>
    %127 = vector.shape_cast %124 : vector<16x256xf32> to vector<1x16x256xf32>
    tpu.vector_store %arg14[%c0_33, %c0_34, %c0_35], %127 {strides = array<i32>} : memref<1x16x256xf32, #tpu.memory_space<vmem>>, vector<1x16x256xf32>,
    %c0_36 = arith.constant 0 : index
    %c0_37 = arith.constant 0 : index
    %c0_38 = arith.constant 0 : index
    %128 = vector.load %arg15[%c0_36, %c0_37, %c0_38] : memref<1x4x256xf32, #tpu.memory_space<vmem>>, vector<1x4x256xf32>
    %129 = vector.shape_cast %128 : vector<1x4x256xf32> to vector<4x256xf32>
    %130 = vector.shape_cast %92 : vector<4x256xf32> to vector<1x4x256xf32>
    tpu.vector_store %arg15[%c0_36, %c0_37, %c0_38], %130 {strides = array<i32>} : memref<1x4x256xf32, #tpu.memory_space<vmem>>, vector<1x4x256xf32>,
    return
  }
  func.func @transform_0(%arg0: i32) -> (i32, i32, i32) {
    %c0_i32 = arith.constant 0 : i32
    %c0_i32_0 = arith.constant 0 : i32
    %c0_i32_1 = arith.constant 0 : i32
    return %arg0, %c0_i32, %c0_i32_0 : i32, i32, i32
  }
  func.func @transform_1(%arg0: i32) -> (i32, i32, i32) {
    %c0_i32 = arith.constant 0 : i32
    %c0_i32_0 = arith.constant 0 : i32
    %c0_i32_1 = arith.constant 0 : i32
    return %arg0, %c0_i32, %c0_i32_0 : i32, i32, i32
  }
  func.func @transform_2(%arg0: i32) -> (i32, i32) {
    %c0_i32 = arith.constant 0 : i32
    %c0_i32_0 = arith.constant 0 : i32
    %c0_i32_1 = arith.constant 0 : i32
    return %c0_i32, %c0_i32_0 : i32, i32
  }
  func.func @transform_3(%arg0: i32) -> (i32, i32) {
    %c0_i32 = arith.constant 0 : i32
    %c0_i32_0 = arith.constant 0 : i32
    %c0_i32_1 = arith.constant 0 : i32
    return %c0_i32, %c0_i32_0 : i32, i32
  }
  func.func @transform_4(%arg0: i32) -> (i32, i32) {
    %c0_i32 = arith.constant 0 : i32
    %c0_i32_0 = arith.constant 0 : i32
    %c0_i32_1 = arith.constant 0 : i32
    return %c0_i32, %c0_i32_0 : i32, i32
  }
  func.func @transform_5(%arg0: i32) -> (i32, i32) {
    %c0_i32 = arith.constant 0 : i32
    %c0_i32_0 = arith.constant 0 : i32
    %c0_i32_1 = arith.constant 0 : i32
    return %c0_i32, %c0_i32_0 : i32, i32
  }
  func.func @transform_6(%arg0: i32) -> (i32, i32) {
    %c0_i32 = arith.constant 0 : i32
    %c0_i32_0 = arith.constant 0 : i32
    %c0_i32_1 = arith.constant 0 : i32
    return %c0_i32, %c0_i32_0 : i32, i32
  }
  func.func @transform_7(%arg0: i32) -> (i32, i32) {
    %c0_i32 = arith.constant 0 : i32
    %c0_i32_0 = arith.constant 0 : i32
    %c0_i32_1 = arith.constant 0 : i32
    return %c0_i32, %c0_i32_0 : i32, i32
  }
  func.func @transform_8(%arg0: i32) -> (i32, i32) {
    %c0_i32 = arith.constant 0 : i32
    %c0_i32_0 = arith.constant 0 : i32
    %c0_i32_1 = arith.constant 0 : i32
    return %c0_i32, %c0_i32_0 : i32, i32
  }
  func.func @transform_9(%arg0: i32) -> (i32, i32) {
    %c0_i32 = arith.constant 0 : i32
    %c0_i32_0 = arith.constant 0 : i32
    %c0_i32_1 = arith.constant 0 : i32
    return %c0_i32, %c0_i32_0 : i32, i32
  }
  func.func @transform_10(%arg0: i32) -> (i32, i32) {
    %c0_i32 = arith.constant 0 : i32
    %c0_i32_0 = arith.constant 0 : i32
    %c0_i32_1 = arith.constant 0 : i32
    return %c0_i32, %c0_i32_0 : i32, i32
  }
  func.func @transform_11(%arg0: i32) -> (i32, i32) {
    %c0_i32 = arith.constant 0 : i32
    %c0_i32_0 = arith.constant 0 : i32
    %c0_i32_1 = arith.constant 0 : i32
    return %c0_i32, %c0_i32_0 : i32, i32
  }
  func.func @transform_12(%arg0: i32) -> (i32, i32) {
    %c0_i32 = arith.constant 0 : i32
    %c0_i32_0 = arith.constant 0 : i32
    %c0_i32_1 = arith.constant 0 : i32
    return %c0_i32, %c0_i32_0 : i32, i32
  }
  func.func @transform_13(%arg0: i32) -> (i32, i32, i32) {
    %c0_i32 = arith.constant 0 : i32
    %c0_i32_0 = arith.constant 0 : i32
    %c0_i32_1 = arith.constant 0 : i32
    return %arg0, %c0_i32, %c0_i32_0 : i32, i32, i32
  }
  func.func @transform_14(%arg0: i32) -> (i32, i32, i32) {
    %c0_i32 = arith.constant 0 : i32
    %c0_i32_0 = arith.constant 0 : i32
    %c0_i32_1 = arith.constant 0 : i32
    return %arg0, %c0_i32, %c0_i32_0 : i32, i32, i32
  }
}

</mosaic_0001>

<llo_original>
// kernel: tpu_custom_call.1
$region0: #{tpu_custom_call.1}
  #allocation0 [shape = 'u32[]', space=smem, size = 0x4, offset = 0x4, fixed_abs, tag = 'smem constant byte address 0x4 - core index']
  #allocation1 [shape = 'u32[144,128]{1,0:T(1,128)}', space=vmem, size = 0x12000, scoped, tag = 'internal scratch']
  %s0 = inlined_call_operand.hbm [shape: f32[8,256], index: 0, kind: input, shape index: {}]
  %s1 = inlined_call_operand.hbm [shape: f32[8,256], index: 1, kind: output, shape index: {}]
  %s2 = sld [smem:[#allocation0]]
  $region18: #{tpu_custom_call.1} parent=0
    _
  %s4 = ssub.s32 1, %s2
  %s5 = scalar_select 0, %s4, %s2
  $region1: #{tpu_custom_call.1} parent=0
    #allocation2 [shape = 'u8[8192]{0}', space=vmem, size = 0x2000, scoped, tag = 'input window, operand 0, single buffered']
    #allocation3 [shape = 's32[1]{0}', space=sflag, size = 0x4, scoped, tag = 'scoped memory for tpu_custom_call.1']
    #allocation4 [shape = 's32[1]{0}', space=sflag, size = 0x4, scoped, tag = 'scoped memory for tpu_custom_call.1']
    #allocation5 [shape = 'u8[8192]{0}', space=vmem, size = 0x2000, scoped, tag = 'output window, operand 0, single buffered']
    %6 = vsyncpa [#allocation3], 0
    %7 = vsyncpa [#allocation4], 0
    // Predicated region
    $region2: #{tpu_custom_call.1} parent=1 // pred_check
      _
    $region3: #{tpu_custom_call.1} parent=1 // pred_check_branch
      %9 = sbr.rel (0) target = $region5
    $region4: #{tpu_custom_call.1} parent=1 // pred_region
      %s11 = ssub.s32 256, 256
      %12 = vsyncadd [#allocation3], %s11
      %s14 = sshll.u32 [#allocation2], 4
      %s15 = int_to_ptr.vmem [resolvable:$true] %s14
      %17 = dma.hbm_to_vmem [thread:$0]  %s0, 256, %s15, [#allocation3]
    $region5: #{tpu_custom_call.1} parent=1 // pred_fallthru
      _
    // Predicated region
    $region6: #{tpu_custom_call.1} parent=1 // pred_check
      _
    $region7: #{tpu_custom_call.1} parent=1 // pred_check_branch
      %19 = sbr.rel (0) target = $region9
    $region8: #{tpu_custom_call.1} parent=1 // pred_region
      %20 = dma.done [#allocation3], 256
    $region9: #{tpu_custom_call.1} parent=1 // pred_fallthru
      _
    %v21 = vld [vmem:[#allocation2] sm:$0xff]
    %v22 = vld [vmem:[#allocation2 + $0x8] sm:$0xff]
    %23 = vrot.lane.b32.xlu0 %v21, 3
    %v24 = vpop.permute.xlu0 %23
    %25 = vrot.lane.b32.xlu0 %v22, 3
    %v26 = vpop.permute.xlu0 %25
    %v27 = vlaneseq
    %v28 = vand.u32 %v27, 127
    %vm29 = vcmp.lt.s32.totalorder %v28, 3
    %v30 = vsel %vm29, %v24, %v26
    %v31 = vsel %vm29, %v26, %v24
    %32 = vst [vmem:[#allocation5] sm:$0xff] %v31
    %33 = vst [vmem:[#allocation5 + $0x8] sm:$0xff] %v30
    // Predicated region
    $region10: #{tpu_custom_call.1} parent=1 // pred_check
      _
    $region11: #{tpu_custom_call.1} parent=1 // pred_check_branch
      %35 = sbr.rel (0) target = $region13
    $region12: #{tpu_custom_call.1} parent=1 // pred_region
      %s37 = ssub.s32 256, 256
      %38 = vsyncadd [#allocation4], %s37
      %s40 = sshll.u32 [#allocation5], 4
      %s41 = int_to_ptr.vmem [resolvable:$true] %s40
      %43 = dma.vmem_to_hbm [thread:$0]  %s41, 256, %s1, [#allocation4]
    $region13: #{tpu_custom_call.1} parent=1 // pred_fallthru
      _
    // Predicated region
    $region14: #{tpu_custom_call.1} parent=1 // pred_check
      _
    $region15: #{tpu_custom_call.1} parent=1 // pred_check_branch
      %45 = sbr.rel (0) target = $region17
    $region16: #{tpu_custom_call.1} parent=1 // pred_region
      %46 = dma.done [#allocation4], 256
    $region17: #{tpu_custom_call.1} parent=1 // pred_fallthru
      _
    %47 = vsyncpa [#allocation3], 1
    %48 = vsyncpa [#allocation4], 1

// kernel: _lambda_.1
$region0: #{_lambda_.1}
  #allocation0 [shape = 'u32[]', space=smem, size = 0x4, offset = 0x4, fixed_abs, tag = 'smem constant byte address 0x4 - core index']
  #allocation1 [shape = 'u32[144,128]{1,0:T(1,128)}', space=vmem, size = 0x12000, scoped, tag = 'internal scratch']
  %s0 = inlined_call_operand.vmem [shape: bf16[2,8,256], index: 0, kind: input, shape index: {}]
  %s1 = inlined_call_operand.vmem [shape: bf16[2,4,256], index: 1, kind: input, shape index: {}]
  %s2 = inlined_call_operand.vmem [shape: bf16[4,24], index: 2, kind: input, shape index: {}]
  %s3 = inlined_call_operand.vmem [shape: f32[4,1], index: 3, kind: input, shape index: {}]
  %s4 = inlined_call_operand.vmem [shape: f32[3,256], index: 4, kind: input, shape index: {}, may-alias: {4,10}]
  %s5 = inlined_call_operand.vmem [shape: bf16[4,36], index: 5, kind: input, shape index: {}]
  %s6 = inlined_call_operand.vmem [shape: f32[4,1], index: 6, kind: input, shape index: {}]
  %s7 = inlined_call_operand.vmem [shape: f32[9,256], index: 7, kind: input, shape index: {}]
  %s8 = inlined_call_operand.vmem [shape: bf16[16,12], index: 8, kind: input, shape index: {}]
  %s9 = inlined_call_operand.vmem [shape: f32[16,1], index: 9, kind: input, shape index: {}]
  %s10 = inlined_call_operand.vmem [shape: f32[3,256], index: 10, kind: input, shape index: {}, may-alias: {4,10}]
  %s11 = inlined_call_operand.vmem [shape: bf16[16,8], index: 11, kind: input, shape index: {}]
  %s12 = inlined_call_operand.vmem [shape: f32[16,1], index: 12, kind: input, shape index: {}]
  %s13 = inlined_call_operand.vmem [shape: f32[2,16,256], index: 13, kind: output, shape index: {0}]
  %s14 = inlined_call_operand.vmem [shape: f32[2,4,256], index: 14, kind: output, shape index: {1}]
  %15 = xla_tuple %s13, %s14
  %s16 = sld [smem:[#allocation0]]
  $region93: #{_lambda_.1} parent=0
    _
  %s18 = ssub.s32 1, %s16
  %s19 = scalar_select 0, %s18, %s16
  loop: start=0, step=1, limit=4
  $region2: #{_lambda_.1} parent=0 // loop_pre_header
    _
  $region3: #{_lambda_.1} parent=0 // loop_header
    %s21 = sphi 0, %s25
    %p22 = scmp.ge.s32.totalorder %s21, 4
    %s31 = sphi 0, %s33
    %s34 = sphi 0, %s31
    %s35 = sphi 0, %s34
    %s51 = sphi 0, %s35
    %s57 = sphi 0, %s59
    %s60 = sphi 0, %s57
    %s61 = sphi 0, %s60
    %s77 = sphi 0, %s61
    %s81 = sphi 0, %s81
    %s83 = sphi 0, %s81
    %s84 = sphi 0, %s83
    %s98 = sphi 0, %s84
    %s102 = sphi 0, %s102
    %s104 = sphi 0, %s102
    %s105 = sphi 0, %s104
    %s119 = sphi 0, %s105
    %s123 = sphi 0, %s123
    %s125 = sphi 0, %s123
    %s126 = sphi 0, %s125
    %s140 = sphi 0, %s126
    %s144 = sphi 0, %s144
    %s146 = sphi 0, %s144
    %s147 = sphi 0, %s146
    %s161 = sphi 0, %s147
    %s165 = sphi 0, %s165
    %s167 = sphi 0, %s165
    %s168 = sphi 0, %s167
    %s182 = sphi 0, %s168
    %s186 = sphi 0, %s186
    %s188 = sphi 0, %s186
    %s189 = sphi 0, %s188
    %s203 = sphi 0, %s189
    %s207 = sphi 0, %s207
    %s209 = sphi 0, %s207
    %s210 = sphi 0, %s209
    %s224 = sphi 0, %s210
    %s228 = sphi 0, %s228
    %s230 = sphi 0, %s228
    %s231 = sphi 0, %s230
    %s245 = sphi 0, %s231
    %s249 = sphi 0, %s249
    %s251 = sphi 0, %s249
    %s252 = sphi 0, %s251
    %s266 = sphi 0, %s252
    %s270 = sphi 0, %s270
    %s272 = sphi 0, %s270
    %s273 = sphi 0, %s272
    %s287 = sphi 0, %s273
    %s291 = sphi 0, %s291
    %s293 = sphi 0, %s291
    %s294 = sphi 0, %s293
    %s308 = sphi 0, %s294
    %s314 = sphi 0, %s316
    %s317 = sphi 0, %s314
    %s318 = sphi 0, %s317
    %s334 = sphi 0, %s318
    %s340 = sphi 0, %s342
    %s343 = sphi 0, %s340
    %s344 = sphi 0, %s343
    %s360 = sphi 0, %s344
  $region4: #{_lambda_.1} parent=0 // loop_header_branch
    %24 = sbr.rel (%p22) target = $region8
  $region5: #{_lambda_.1} parent=0 // loop_body
    %s26 = ssub.s32 %s21, 1
    %s27 = ssub.s32 %s21, 2
    %s28 = sadd.s32 %s21, 1
    %s29 = ssub.s32 %s21, %s28
    %p30 = scmp.eq.s32.totalorder %s29, 0
    %s32 = sadd.s32 %s31, 1
    %s33 = scalar_select %p30, %s31, %s32
    %p36 = pneg %p30
    %p37 = scmp.eq.s32.totalorder %s21, 1
    %p38 = por %p36, %p37
    %p39 = scmp.ne.s32.totalorder %s31, %s34
    %p40 = scmp.eq.s32.totalorder %s21, 0
    %p41 = por %p39, %p40
    %p42 = scmp.ne.s32.totalorder %s31, %s34
    %p43 = scmp.eq.s32.totalorder %s26, 1
    %p44 = por %p42, %p43
    %p45 = scmp.ne.s32.totalorder %s34, %s35
    %p46 = scmp.eq.s32.totalorder %s26, 0
    %p47 = por %p45, %p46
    %p48 = scmp.ne.s32.totalorder %s34, %s35
    %p49 = scmp.eq.s32.totalorder %s27, 1
    %p50 = por %p48, %p49
    %p52 = scmp.ne.s32.totalorder %s35, %s51
    %p53 = scmp.eq.s32.totalorder %s27, 0
    %p54 = por %p52, %p53
    %s55 = ssub.s32 %s21, %s28
    %p56 = scmp.eq.s32.totalorder %s55, 0
    %s58 = sadd.s32 %s57, 1
    %s59 = scalar_select %p56, %s57, %s58
    %p62 = pneg %p56
    %p63 = scmp.eq.s32.totalorder %s21, 1
    %p64 = por %p62, %p63
    %p65 = scmp.ne.s32.totalorder %s57, %s60
    %p66 = scmp.eq.s32.totalorder %s21, 0
    %p67 = por %p65, %p66
    %p68 = scmp.ne.s32.totalorder %s57, %s60
    %p69 = scmp.eq.s32.totalorder %s26, 1
    %p70 = por %p68, %p69
    %p71 = scmp.ne.s32.totalorder %s60, %s61
    %p72 = scmp.eq.s32.totalorder %s26, 0
    %p73 = por %p71, %p72
    %p74 = scmp.ne.s32.totalorder %s60, %s61
    %p75 = scmp.eq.s32.totalorder %s27, 1
    %p76 = por %p74, %p75
    %p78 = scmp.ne.s32.totalorder %s61, %s77
    %p79 = scmp.eq.s32.totalorder %s27, 0
    %p80 = por %p78, %p79
    %s82 = sadd.s32 %s81, 1
    %p85 = scmp.eq.s32.totalorder %s21, 1
    %p86 = scmp.ne.s32.totalorder %s81, %s83
    %p87 = scmp.eq.s32.totalorder %s21, 0
    %p88 = por %p86, %p87
    %p89 = scmp.ne.s32.totalorder %s81, %s83
    %p90 = scmp.eq.s32.totalorder %s26, 1
    %p91 = por %p89, %p90
    %p92 = scmp.ne.s32.totalorder %s83, %s84
    %p93 = scmp.eq.s32.totalorder %s26, 0
    %p94 = por %p92, %p93
    %p95 = scmp.ne.s32.totalorder %s83, %s84
    %p96 = scmp.eq.s32.totalorder %s27, 1
    %p97 = por %p95, %p96
    %p99 = scmp.ne.s32.totalorder %s84, %s98
    %p100 = scmp.eq.s32.totalorder %s27, 0
    %p101 = por %p99, %p100
    %s103 = sadd.s32 %s102, 1
    %p106 = scmp.eq.s32.totalorder %s21, 1
    %p107 = scmp.ne.s32.totalorder %s102, %s104
    %p108 = scmp.eq.s32.totalorder %s21, 0
    %p109 = por %p107, %p108
    %p110 = scmp.ne.s32.totalorder %s102, %s104
    %p111 = scmp.eq.s32.totalorder %s26, 1
    %p112 = por %p110, %p111
    %p113 = scmp.ne.s32.totalorder %s104, %s105
    %p114 = scmp.eq.s32.totalorder %s26, 0
    %p115 = por %p113, %p114
    %p116 = scmp.ne.s32.totalorder %s104, %s105
    %p117 = scmp.eq.s32.totalorder %s27, 1
    %p118 = por %p116, %p117
    %p120 = scmp.ne.s32.totalorder %s105, %s119
    %p121 = scmp.eq.s32.totalorder %s27, 0
    %p122 = por %p120, %p121
    %s124 = sadd.s32 %s123, 1
    %p127 = scmp.eq.s32.totalorder %s21, 1
    %p128 = scmp.ne.s32.totalorder %s123, %s125
    %p129 = scmp.eq.s32.totalorder %s21, 0
    %p130 = por %p128, %p129
    %p131 = scmp.ne.s32.totalorder %s123, %s125
    %p132 = scmp.eq.s32.totalorder %s26, 1
    %p133 = por %p131, %p132
    %p134 = scmp.ne.s32.totalorder %s125, %s126
    %p135 = scmp.eq.s32.totalorder %s26, 0
    %p136 = por %p134, %p135
    %p137 = scmp.ne.s32.totalorder %s125, %s126
    %p138 = scmp.eq.s32.totalorder %s27, 1
    %p139 = por %p137, %p138
    %p141 = scmp.ne.s32.totalorder %s126, %s140
    %p142 = scmp.eq.s32.totalorder %s27, 0
    %p143 = por %p141, %p142
    %s145 = sadd.s32 %s144, 1
    %p148 = scmp.eq.s32.totalorder %s21, 1
    %p149 = scmp.ne.s32.totalorder %s144, %s146
    %p150 = scmp.eq.s32.totalorder %s21, 0
    %p151 = por %p149, %p150
    %p152 = scmp.ne.s32.totalorder %s144, %s146
    %p153 = scmp.eq.s32.totalorder %s26, 1
    %p154 = por %p152, %p153
    %p155 = scmp.ne.s32.totalorder %s146, %s147
    %p156 = scmp.eq.s32.totalorder %s26, 0
    %p157 = por %p155, %p156
    %p158 = scmp.ne.s32.totalorder %s146, %s147
    %p159 = scmp.eq.s32.totalorder %s27, 1
    %p160 = por %p158, %p159
    %p162 = scmp.ne.s32.totalorder %s147, %s161
    %p163 = scmp.eq.s32.totalorder %s27, 0
    %p164 = por %p162, %p163
    %s166 = sadd.s32 %s165, 1
    %p169 = scmp.eq.s32.totalorder %s21, 1
    %p170 = scmp.ne.s32.totalorder %s165, %s167
    %p171 = scmp.eq.s32.totalorder %s21, 0
    %p172 = por %p170, %p171
    %p173 = scmp.ne.s32.totalorder %s165, %s167
    %p174 = scmp.eq.s32.totalorder %s26, 1
    %p175 = por %p173, %p174
    %p176 = scmp.ne.s32.totalorder %s167, %s168
    %p177 = scmp.eq.s32.totalorder %s26, 0
    %p178 = por %p176, %p177
    %p179 = scmp.ne.s32.totalorder %s167, %s168
    %p180 = scmp.eq.s32.totalorder %s27, 1
    %p181 = por %p179, %p180
    %p183 = scmp.ne.s32.totalorder %s168, %s182
    %p184 = scmp.eq.s32.totalorder %s27, 0
    %p185 = por %p183, %p184
    %s187 = sadd.s32 %s186, 1
    %p190 = scmp.eq.s32.totalorder %s21, 1
    %p191 = scmp.ne.s32.totalorder %s186, %s188
    %p192 = scmp.eq.s32.totalorder %s21, 0
    %p193 = por %p191, %p192
    %p194 = scmp.ne.s32.totalorder %s186, %s188
    %p195 = scmp.eq.s32.totalorder %s26, 1
    %p196 = por %p194, %p195
    %p197 = scmp.ne.s32.totalorder %s188, %s189
    %p198 = scmp.eq.s32.totalorder %s26, 0
    %p199 = por %p197, %p198
    %p200 = scmp.ne.s32.totalorder %s188, %s189
    %p201 = scmp.eq.s32.totalorder %s27, 1
    %p202 = por %p200, %p201
    %p204 = scmp.ne.s32.totalorder %s189, %s203
    %p205 = scmp.eq.s32.totalorder %s27, 0
    %p206 = por %p204, %p205
    %s208 = sadd.s32 %s207, 1
    %p211 = scmp.eq.s32.totalorder %s21, 1
    %p212 = scmp.ne.s32.totalorder %s207, %s209
    %p213 = scmp.eq.s32.totalorder %s21, 0
    %p214 = por %p212, %p213
    %p215 = scmp.ne.s32.totalorder %s207, %s209
    %p216 = scmp.eq.s32.totalorder %s26, 1
    %p217 = por %p215, %p216
    %p218 = scmp.ne.s32.totalorder %s209, %s210
    %p219 = scmp.eq.s32.totalorder %s26, 0
    %p220 = por %p218, %p219
    %p221 = scmp.ne.s32.totalorder %s209, %s210
    %p222 = scmp.eq.s32.totalorder %s27, 1
    %p223 = por %p221, %p222
    %p225 = scmp.ne.s32.totalorder %s210, %s224
    %p226 = scmp.eq.s32.totalorder %s27, 0
    %p227 = por %p225, %p226
    %s229 = sadd.s32 %s228, 1
    %p232 = scmp.eq.s32.totalorder %s21, 1
    %p233 = scmp.ne.s32.totalorder %s228, %s230
    %p234 = scmp.eq.s32.totalorder %s21, 0
    %p235 = por %p233, %p234
    %p236 = scmp.ne.s32.totalorder %s228, %s230
    %p237 = scmp.eq.s32.totalorder %s26, 1
    %p238 = por %p236, %p237
    %p239 = scmp.ne.s32.totalorder %s230, %s231
    %p240 = scmp.eq.s32.totalorder %s26, 0
    %p241 = por %p239, %p240
    %p242 = scmp.ne.s32.totalorder %s230, %s231
    %p243 = scmp.eq.s32.totalorder %s27, 1
    %p244 = por %p242, %p243
    %p246 = scmp.ne.s32.totalorder %s231, %s245
    %p247 = scmp.eq.s32.totalorder %s27, 0
    %p248 = por %p246, %p247
    %s250 = sadd.s32 %s249, 1
    %p253 = scmp.eq.s32.totalorder %s21, 1
    %p254 = scmp.ne.s32.totalorder %s249, %s251
    %p255 = scmp.eq.s32.totalorder %s21, 0
    %p256 = por %p254, %p255
    %p257 = scmp.ne.s32.totalorder %s249, %s251
    %p258 = scmp.eq.s32.totalorder %s26, 1
    %p259 = por %p257, %p258
    %p260 = scmp.ne.s32.totalorder %s251, %s252
    %p261 = scmp.eq.s32.totalorder %s26, 0
    %p262 = por %p260, %p261
    %p263 = scmp.ne.s32.totalorder %s251, %s252
    %p264 = scmp.eq.s32.totalorder %s27, 1
    %p265 = por %p263, %p264
    %p267 = scmp.ne.s32.totalorder %s252, %s266
    %p268 = scmp.eq.s32.totalorder %s27, 0
    %p269 = por %p267, %p268
    %s271 = sadd.s32 %s270, 1
    %p274 = scmp.eq.s32.totalorder %s21, 1
    %p275 = scmp.ne.s32.totalorder %s270, %s272
    %p276 = scmp.eq.s32.totalorder %s21, 0
    %p277 = por %p275, %p276
    %p278 = scmp.ne.s32.totalorder %s270, %s272
    %p279 = scmp.eq.s32.totalorder %s26, 1
    %p280 = por %p278, %p279
    %p281 = scmp.ne.s32.totalorder %s272, %s273
    %p282 = scmp.eq.s32.totalorder %s26, 0
    %p283 = por %p281, %p282
    %p284 = scmp.ne.s32.totalorder %s272, %s273
    %p285 = scmp.eq.s32.totalorder %s27, 1
    %p286 = por %p284, %p285
    %p288 = scmp.ne.s32.totalorder %s273, %s287
    %p289 = scmp.eq.s32.totalorder %s27, 0
    %p290 = por %p288, %p289
    %s292 = sadd.s32 %s291, 1
    %p295 = scmp.eq.s32.totalorder %s21, 1
    %p296 = scmp.ne.s32.totalorder %s291, %s293
    %p297 = scmp.eq.s32.totalorder %s21, 0
    %p298 = por %p296, %p297
    %p299 = scmp.ne.s32.totalorder %s291, %s293
    %p300 = scmp.eq.s32.totalorder %s26, 1
    %p301 = por %p299, %p300
    %p302 = scmp.ne.s32.totalorder %s293, %s294
    %p303 = scmp.eq.s32.totalorder %s26, 0
    %p304 = por %p302, %p303
    %p305 = scmp.ne.s32.totalorder %s293, %s294
    %p306 = scmp.eq.s32.totalorder %s27, 1
    %p307 = por %p305, %p306
    %p309 = scmp.ne.s32.totalorder %s294, %s308
    %p310 = scmp.eq.s32.totalorder %s27, 0
    %p311 = por %p309, %p310
    %s312 = ssub.s32 %s21, %s28
    %p313 = scmp.eq.s32.totalorder %s312, 0
    %s315 = sadd.s32 %s314, 1
    %s316 = scalar_select %p313, %s314, %s315
    %p319 = pneg %p313
    %p320 = scmp.eq.s32.totalorder %s21, 1
    %p321 = por %p319, %p320
    %p322 = scmp.ne.s32.totalorder %s314, %s317
    %p323 = scmp.eq.s32.totalorder %s21, 0
    %p324 = por %p322, %p323
    %p325 = scmp.ne.s32.totalorder %s314, %s317
    %p326 = scmp.eq.s32.totalorder %s26, 1
    %p327 = por %p325, %p326
    %p328 = scmp.ne.s32.totalorder %s317, %s318
    %p329 = scmp.eq.s32.totalorder %s26, 0
    %p330 = por %p328, %p329
    %p331 = scmp.ne.s32.totalorder %s317, %s318
    %p332 = scmp.eq.s32.totalorder %s27, 1
    %p333 = por %p331, %p332
    %p335 = scmp.ne.s32.totalorder %s318, %s334
    %p336 = scmp.eq.s32.totalorder %s27, 0
    %p337 = por %p335, %p336
    %s338 = ssub.s32 %s21, %s28
    %p339 = scmp.eq.s32.totalorder %s338, 0
    %s341 = sadd.s32 %s340, 1
    %s342 = scalar_select %p339, %s340, %s341
    %p345 = pneg %p339
    %p346 = scmp.eq.s32.totalorder %s21, 1
    %p347 = por %p345, %p346
    %p348 = scmp.ne.s32.totalorder %s340, %s343
    %p349 = scmp.eq.s32.totalorder %s21, 0
    %p350 = por %p348, %p349
    %p351 = scmp.ne.s32.totalorder %s340, %s343
    %p352 = scmp.eq.s32.totalorder %s26, 1
    %p353 = por %p351, %p352
    %p354 = scmp.ne.s32.totalorder %s343, %s344
    %p355 = scmp.eq.s32.totalorder %s26, 0
    %p356 = por %p354, %p355
    %p357 = scmp.ne.s32.totalorder %s343, %s344
    %p358 = scmp.eq.s32.totalorder %s27, 1
    %p359 = por %p357, %p358
    %p361 = scmp.ne.s32.totalorder %s344, %s360
    %p362 = scmp.eq.s32.totalorder %s27, 0
    %p363 = por %p361, %p362
    %p364 = scmp.le.s32.totalorder 1, %s21
    %p365 = scmp.lt.s32.totalorder %s21, 3
    %p366 = pnand %p364, %p365
    %p367 = pneg %p366
    // Predicated region
    $region9: #{_lambda_.1} parent=5 // pred_check
      _
    $region10: #{_lambda_.1} parent=5 // pred_check_branch
      %369 = sbr.rel (%p366) target = $region12
    $region11: #{_lambda_.1} parent=5 // pred_region
      %s370 = ssub.s32 %s21, 1
      // Predicated region
      $region13: #{_lambda_.1} parent=11 // pred_check
        %p371 = pneg %p94
      $region14: #{_lambda_.1} parent=11 // pred_check_branch
        %373 = sbr.rel (%p371) target = $region16
      $region15: #{_lambda_.1} parent=11 // pred_region
        _
      $region16: #{_lambda_.1} parent=11 // pred_fallthru
        _
      // Predicated region
      $region17: #{_lambda_.1} parent=11 // pred_check
        %p374 = pneg %p115
      $region18: #{_lambda_.1} parent=11 // pred_check_branch
        %376 = sbr.rel (%p374) target = $region20
      $region19: #{_lambda_.1} parent=11 // pred_region
        _
      $region20: #{_lambda_.1} parent=11 // pred_fallthru
        _
      // Predicated region
      $region21: #{_lambda_.1} parent=11 // pred_check
        %p377 = pneg %p136
      $region22: #{_lambda_.1} parent=11 // pred_check_branch
        %379 = sbr.rel (%p377) target = $region24
      $region23: #{_lambda_.1} parent=11 // pred_region
        _
      $region24: #{_lambda_.1} parent=11 // pred_fallthru
        _
      // Predicated region
      $region25: #{_lambda_.1} parent=11 // pred_check
        %p380 = pneg %p157
      $region26: #{_lambda_.1} parent=11 // pred_check_branch
        %382 = sbr.rel (%p380) target = $region28
      $region27: #{_lambda_.1} parent=11 // pred_region
        _
      $region28: #{_lambda_.1} parent=11 // pred_fallthru
        _
      // Predicated region
      $region29: #{_lambda_.1} parent=11 // pred_check
        %p383 = pneg %p178
      $region30: #{_lambda_.1} parent=11 // pred_check_branch
        %385 = sbr.rel (%p383) target = $region32
      $region31: #{_lambda_.1} parent=11 // pred_region
        _
      $region32: #{_lambda_.1} parent=11 // pred_fallthru
        _
      // Predicated region
      $region33: #{_lambda_.1} parent=11 // pred_check
        %p386 = pneg %p199
      $region34: #{_lambda_.1} parent=11 // pred_check_branch
        %388 = sbr.rel (%p386) target = $region36
      $region35: #{_lambda_.1} parent=11 // pred_region
        _
      $region36: #{_lambda_.1} parent=11 // pred_fallthru
        _
      // Predicated region
      $region37: #{_lambda_.1} parent=11 // pred_check
        %p389 = pneg %p220
      $region38: #{_lambda_.1} parent=11 // pred_check_branch
        %391 = sbr.rel (%p389) target = $region40
      $region39: #{_lambda_.1} parent=11 // pred_region
        _
      $region40: #{_lambda_.1} parent=11 // pred_fallthru
        _
      // Predicated region
      $region41: #{_lambda_.1} parent=11 // pred_check
        %p392 = pneg %p241
      $region42: #{_lambda_.1} parent=11 // pred_check_branch
        %394 = sbr.rel (%p392) target = $region44
      $region43: #{_lambda_.1} parent=11 // pred_region
        _
      $region44: #{_lambda_.1} parent=11 // pred_fallthru
        _
      // Predicated region
      $region45: #{_lambda_.1} parent=11 // pred_check
        %p395 = pneg %p262
      $region46: #{_lambda_.1} parent=11 // pred_check_branch
        %397 = sbr.rel (%p395) target = $region48
      $region47: #{_lambda_.1} parent=11 // pred_region
        _
      $region48: #{_lambda_.1} parent=11 // pred_fallthru
        _
      // Predicated region
      $region49: #{_lambda_.1} parent=11 // pred_check
        %p398 = pneg %p283
      $region50: #{_lambda_.1} parent=11 // pred_check_branch
        %400 = sbr.rel (%p398) target = $region52
      $region51: #{_lambda_.1} parent=11 // pred_region
        _
      $region52: #{_lambda_.1} parent=11 // pred_fallthru
        _
      // Predicated region
      $region53: #{_lambda_.1} parent=11 // pred_check
        %p401 = pneg %p304
      $region54: #{_lambda_.1} parent=11 // pred_check_branch
        %403 = sbr.rel (%p401) target = $region56
      $region55: #{_lambda_.1} parent=11 // pred_region
        _
      $region56: #{_lambda_.1} parent=11 // pred_fallthru
        _
    $region12: #{_lambda_.1} parent=5 // pred_fallthru
      _
    %p404 = scmp.lt.s32.totalorder %s21, 2
    // Predicated region
    $region57: #{_lambda_.1} parent=5 // pred_check
      %p405 = pneg %p404
    $region58: #{_lambda_.1} parent=5 // pred_check_branch
      %407 = sbr.rel (%p405) target = $region60
    $region59: #{_lambda_.1} parent=5 // pred_region
      // Predicated region
      $region61: #{_lambda_.1} parent=59 // pred_check
        %p408 = pneg %p41
      $region62: #{_lambda_.1} parent=59 // pred_check_branch
        %410 = sbr.rel (%p408) target = $region64
      $region63: #{_lambda_.1} parent=59 // pred_region
        %p411 = scmp.lt.s32.totalorder %s21, 1
        %s412 = scalar_select %p411, %s21, 1
        %s413 = smul.addr %s412, 2
        %s414 = smul.addr %s413, 4
        %s415 = scalar_lea.vmem %s0, %s414
      $region64: #{_lambda_.1} parent=59 // pred_fallthru
        _
      // Predicated region
      $region65: #{_lambda_.1} parent=59 // pred_check
        %p416 = pneg %p67
      $region66: #{_lambda_.1} parent=59 // pred_check_branch
        %418 = sbr.rel (%p416) target = $region68
      $region67: #{_lambda_.1} parent=59 // pred_region
        %p419 = scmp.lt.s32.totalorder %s21, 1
        %s420 = scalar_select %p419, %s21, 1
        %s421 = smul.addr %s420, 2
        %s422 = smul.addr %s421, 2
        %s423 = scalar_lea.vmem %s1, %s422
      $region68: #{_lambda_.1} parent=59 // pred_fallthru
        _
    $region60: #{_lambda_.1} parent=5 // pred_fallthru
      _
    %p424 = scmp.le.s32.totalorder 1, %s21
    %p425 = scmp.lt.s32.totalorder %s21, 3
    %p426 = pnand %p424, %p425
    %p427 = pneg %p426
    // Predicated region
    $region69: #{_lambda_.1} parent=5 // pred_check
      _
    $region70: #{_lambda_.1} parent=5 // pred_check_branch
      %429 = sbr.rel (%p426) target = $region72
    $region71: #{_lambda_.1} parent=5 // pred_region
      %s430 = ssub.s32 %s21, 1
      %p431 = scmp.lt.s32.totalorder %s26, 1
      %s432 = scalar_select %p431, %s26, 1
      %s433 = smul.addr %s432, 2
      %s434 = smul.addr %s433, 4
      %s435 = scalar_lea.vmem %s0, %s434
      %p436 = pneg %p47
      %p437 = pneg %p44
      %p438 = scmp.lt.s32.totalorder %s26, 1
      %s439 = scalar_select %p438, %s26, 1
      %s440 = smul.addr %s439, 2
      %s441 = smul.addr %s440, 2
      %s442 = scalar_lea.vmem %s1, %s441
      %p443 = pneg %p73
      %p444 = pneg %p70
      %p445 = pneg %p94
      %p446 = pneg %p91
      %p447 = pneg %p115
      %p448 = pneg %p112
      %p449 = pneg %p136
      %p450 = pneg %p133
      %p451 = pneg %p157
      %p452 = pneg %p154
      %p453 = pneg %p178
      %p454 = pneg %p175
      %p455 = pneg %p199
      %p456 = pneg %p196
      %p457 = pneg %p220
      %p458 = pneg %p217
      %p459 = pneg %p241
      %p460 = pneg %p238
      %p461 = pneg %p262
      %p462 = pneg %p259
      %p463 = pneg %p283
      %p464 = pneg %p280
      %p465 = pneg %p304
      %p466 = pneg %p301
      %p467 = pneg %p330
      %p468 = pneg %p327
      %p469 = scmp.lt.s32.totalorder %s26, 1
      %s470 = scalar_select %p469, %s26, 1
      %s471 = smul.addr %s470, 4
      %s472 = smul.addr %s471, 8
      %s473 = scalar_lea.vmem %s13, %s472
      %p474 = pneg %p356
      %p475 = pneg %p353
      %p476 = scmp.lt.s32.totalorder %s26, 1
      %s477 = scalar_select %p476, %s26, 1
      %s478 = smul.addr %s477, 2
      %s479 = smul.addr %s478, 4
      %s480 = scalar_lea.vmem %s14, %s479
      %p481 = scmp.lt.s32.totalorder %s26, 1
      %s482 = scalar_select %p481, %s26, 1
      %s483 = smul.addr %s482, 2
      %s484 = smul.addr %s483, 4
      %s485 = scalar_lea.vmem %s0, %s484
      %p486 = scmp.lt.s32.totalorder %s26, 1
      %s487 = scalar_select %p486, %s26, 1
      %s488 = smul.addr %s487, 2
      %s489 = smul.addr %s488, 2
      %s490 = scalar_lea.vmem %s1, %s489
      %p491 = scmp.lt.s32.totalorder %s26, 1
      %s492 = scalar_select %p491, %s26, 1
      %s493 = smul.addr %s492, 4
      %s494 = smul.addr %s493, 8
      %s495 = scalar_lea.vmem %s13, %s494
      %p496 = scmp.lt.s32.totalorder %s26, 1
      %s497 = scalar_select %p496, %s26, 1
      %s498 = smul.addr %s497, 2
      %s499 = smul.addr %s498, 4
      %s500 = scalar_lea.vmem %s14, %s499
      %v502 = vld [vmem:[%s485] sm:$0xff]
      %v503 = vunpack.c.l.bf16 %v502
      %v504 = vunpack.c.h.bf16 %v502
      %v505 = vld [vmem:[%s4] sm:$0x77]
      %507 = vrot.lane.b32.xlu0 %v504, 64
      %v508 = vpop.permute.xlu0 %507
      %511 = vrot.lane.b32.xlu0 %v503, 64
      %v512 = vpop.permute.xlu0 %511
      %vm513 = vcmask 523264
      %v514 = vsel %vm513, %v512, %v508
      %v517 = vsel %vm513, %v508, %v512
      %v519 = vlaneseq
      %v520 = vshrl.u32 %v519, 7
      %v521 = vsub.s32 0, %v520
      %v522 = vrot.slane %v505, %v521
      %v523 = vlaneseq
      %v524 = vshrl.u32 %v523, 7
      %v525 = vsub.s32 4, %v524
      %v526 = vrot.slane %v505, %v525
      %v529 = vlaneseq
      %v530 = vshrl.u32 %v529, 7
      %v531 = vsub.s32 0, %v530
      %v532 = vrot.slane %v522, %v531
      %v533 = vlaneseq
      %v534 = vshrl.u32 %v533, 7
      %v535 = vsub.s32 0, %v534
      %v536 = vrot.slane %v526, %v535
      %v537 = vmul.f32 %v517, %v532
      %v538 = vmul.f32 %v514, %v536
      %v539 = vlaneseq
      %v540 = vshrl.u32 %v539, 7
      %v541 = vsub.s32 1, %v540
      %v542 = vrot.slane %v505, %v541
      %v543 = vlaneseq
      %v544 = vshrl.u32 %v543, 7
      %v545 = vsub.s32 5, %v544
      %v546 = vrot.slane %v505, %v545
      %v549 = vlaneseq
      %v550 = vshrl.u32 %v549, 7
      %v551 = vsub.s32 1, %v550
      %v552 = vrot.slane %v542, %v551
      %v553 = vlaneseq
      %v554 = vshrl.u32 %v553, 7
      %v555 = vsub.s32 1, %v554
      %v556 = vrot.slane %v546, %v555
      %v557 = vmul.f32 %v503, %v552
      %v558 = vmul.f32 %v504, %v556
      %v559 = vlaneseq
      %v560 = vshrl.u32 %v559, 7
      %v561 = vsub.s32 2, %v560
      %v562 = vrot.slane %v505, %v561
      %v563 = vlaneseq
      %v564 = vshrl.u32 %v563, 7
      %v565 = vsub.s32 6, %v564
      %v566 = vrot.slane %v505, %v565
      %v569 = vlaneseq
      %v570 = vshrl.u32 %v569, 7
      %v571 = vsub.s32 2, %v570
      %v572 = vrot.slane %v562, %v571
      %v573 = vlaneseq
      %v574 = vshrl.u32 %v573, 7
      %v575 = vsub.s32 2, %v574
      %v576 = vrot.slane %v566, %v575
      %v577 = vmul.f32 %v514, %v572
      %v578 = vmul.f32 %v517, %v576
      %v579 = vld [vmem:[%s2] sm:$0x3]
      %v580 = vpack.c.bf16 %v557, %v537
      %v581 = vpack.c.bf16 %v558, %v538
      %v582 = vpack.c.bf16 %v577, %v577
      %v583 = vpack.c.bf16 %v578, %v578
      %v584 = vld [vmem:[%s3] sm:$0xf]
      %586 = vset.pattern.permute.xlu0 0
      %587 = vperm.xlu0 %586, %v584
      %v588 = vpop.permute.xlu0 %587
      %vm590 = vcmask 195584
      %v592 = vsel %vm590, %v579, 0
      %vm594 = vcmask 1043456
      %v596 = vsel %vm594, %v582, 0
      %v599 = vsel %vm594, %v583, 0
      %601 = vmatprep.subr.bf16.mxu0 %v581
      %602 = vmatpush1.bf16.msra.mxu0 %v580
      %603 = vmatprep.subr.bf16.mxu0 %v599
      %604 = vmatpush1.bf16.msra.mxu0 %v596
      %605 = vmatprep.subr.bf16.mxu0 0
      %606 = vmatpush1.bf16.msra.mxu0 0
      %607 = vmatprep.subr.bf16.mxu0 0
      %608 = vmatpush1.bf16.msra.mxu0 0
      %609 = vmatprep.subr.bf16.mxu0 0
      %610 = vmatpush1.bf16.msra.mxu0 0
      %611 = vmatprep.subr.bf16.mxu0 0
      %612 = vmatpush1.bf16.msra.mxu0 0
      %613 = vmatprep.subr.bf16.mxu0 0
      %614 = vmatpush1.bf16.msra.mxu0 0
      %615 = vmatprep.subr.bf16.mxu0 0
      %616 = vmatpush1.bf16.msra.mxu0 0
      %617 = vmatprep.subr.bf16.mxu0 0
      %618 = vmatpush1.bf16.msra.mxu0 0
      %619 = vmatprep.subr.bf16.mxu0 0
      %620 = vmatpush1.bf16.msra.mxu0 0
      %621 = vmatprep.subr.bf16.mxu0 0
      %622 = vmatpush1.bf16.msra.mxu0 0
      %623 = vmatprep.subr.bf16.mxu0 0
      %624 = vmatpush1.bf16.msra.mxu0 0
      %625 = vmatprep.subr.bf16.mxu0 0
      %626 = vmatpush1.bf16.msra.mxu0 0
      %627 = vmatprep.subr.bf16.mxu0 0
      %628 = vmatpush1.bf16.msra.mxu0 0
      %629 = vmatprep.subr.bf16.mxu0 0
      %630 = vmatpush1.bf16.msra.mxu0 0
      %631 = vmatprep.subr.bf16.mxu0 0
      %632 = vmatpush1.bf16.msra.mxu0 0
      %633 = vmatprep.mubr.bf16.mxu0 0
      %634 = vmatmul.mubr.bf16.gmra.mrb[0].mxu0 %v592
      %v635 = vpop.f32.mrb[0].mxu0
      %v636 = vadd.f32 %v588, %v635
      %v637 = vpop.f32.mrb[0].mxu0
      %v638 = vadd.f32 %v588, %v637
      %v639 = vpop.f32.mrb[0].mxu0
      %v640 = vpop.f32.mrb[0].mxu0
      %641 = vdwg.mxu0
      %v642 = vmax.f32 %v636, 0.0
      %v643 = vmax.f32 %v638, 0.0
      %v644 = vld [vmem:[%s490] sm:$0xf]
      %v645 = vunpack.c.l.bf16 %v644
      %v647 = vcombine.high %v645, %v645
      %v649 = vadd.f32 %v642, %v645
      %v650 = vadd.f32 %v643, %v647
      %v651 = vld [vmem:[%s7] sm:$0xff]
      %v652 = vld [vmem:[%s7 + $0x8] sm:$0xff]
      %v653 = vld [vmem:[%s7 + $0x10] sm:$0x1]
      %v654 = vld [vmem:[%s7 + $0x18] sm:$0x1]
      %656 = vrot.lane.b32.xlu0 %v650, 9
      %v657 = vpop.permute.xlu0 %656
      %660 = vrot.lane.b32.xlu0 %v649, 9
      %v661 = vpop.permute.xlu0 %660
      %vm662 = vcmask 72704
      %v663 = vsel %vm662, %v661, %v657
      %v666 = vsel %vm662, %v657, %v661
      %v667 = vlaneseq
      %v668 = vshrl.u32 %v667, 7
      %v669 = vsub.s32 0, %v668
      %v670 = vrot.slane %v651, %v669
      %v671 = vlaneseq
      %v672 = vshrl.u32 %v671, 7
      %v673 = vsub.s32 0, %v672
      %v674 = vrot.slane %v652, %v673
      %v675 = vmul.f32 %v666, %v670
      %v676 = vmul.f32 %v663, %v674
      %677 = vrot.lane.b32.xlu0 %v650, 8
      %v678 = vpop.permute.xlu0 %677
      %680 = vrot.lane.b32.xlu0 %v649, 8
      %v681 = vpop.permute.xlu0 %680
      %vm682 = vcmask 64512
      %v683 = vsel %vm682, %v681, %v678
      %v686 = vsel %vm682, %v678, %v681
      %v687 = vlaneseq
      %v688 = vshrl.u32 %v687, 7
      %v689 = vsub.s32 1, %v688
      %v690 = vrot.slane %v651, %v689
      %v691 = vlaneseq
      %v692 = vshrl.u32 %v691, 7
      %v693 = vsub.s32 1, %v692
      %v694 = vrot.slane %v652, %v693
      %v695 = vmul.f32 %v686, %v690
      %v696 = vmul.f32 %v683, %v694
      %697 = vrot.lane.b32.xlu0 %v650, 7
      %v698 = vpop.permute.xlu0 %697
      %700 = vrot.lane.b32.xlu0 %v649, 7
      %v701 = vpop.permute.xlu0 %700
      %vm702 = vcmask 56320
      %v703 = vsel %vm702, %v701, %v698
      %v706 = vsel %vm702, %v698, %v701
      %v707 = vlaneseq
      %v708 = vshrl.u32 %v707, 7
      %v709 = vsub.s32 2, %v708
      %v710 = vrot.slane %v651, %v709
      %v711 = vlaneseq
      %v712 = vshrl.u32 %v711, 7
      %v713 = vsub.s32 2, %v712
      %v714 = vrot.slane %v652, %v713
      %v715 = vmul.f32 %v706, %v710
      %v716 = vmul.f32 %v703, %v714
      %717 = vrot.lane.b32.xlu0 %v650, 1
      %v718 = vpop.permute.xlu0 %717
      %720 = vrot.lane.b32.xlu0 %v649, 1
      %v721 = vpop.permute.xlu0 %720
      %vm722 = vcmask 7168
      %v723 = vsel %vm722, %v721, %v718
      %v726 = vsel %vm722, %v718, %v721
      %v727 = vlaneseq
      %v728 = vshrl.u32 %v727, 7
      %v729 = vsub.s32 3, %v728
      %v730 = vrot.slane %v651, %v729
      %v731 = vlaneseq
      %v732 = vshrl.u32 %v731, 7
      %v733 = vsub.s32 3, %v732
      %v734 = vrot.slane %v652, %v733
      %v735 = vmul.f32 %v726, %v730
      %v736 = vmul.f32 %v723, %v734
      %v737 = vlaneseq
      %v738 = vshrl.u32 %v737, 7
      %v739 = vsub.s32 4, %v738
      %v740 = vrot.slane %v651, %v739
      %v741 = vlaneseq
      %v742 = vshrl.u32 %v741, 7
      %v743 = vsub.s32 4, %v742
      %v744 = vrot.slane %v652, %v743
      %v745 = vmul.f32 %v649, %v740
      %v746 = vmul.f32 %v650, %v744
      %747 = vrot.lane.b32.xlu0 %v649, 127
      %v748 = vpop.permute.xlu0 %747
      %749 = vrot.lane.b32.xlu0 %v650, 127
      %v750 = vpop.permute.xlu0 %749
      %vm751 = vcmask 1039360
      %v752 = vsel %vm751, %v748, %v750
      %v756 = vsel %vm751, %v750, %v748
      %v757 = vlaneseq
      %v758 = vshrl.u32 %v757, 7
      %v759 = vsub.s32 5, %v758
      %v760 = vrot.slane %v651, %v759
      %v761 = vlaneseq
      %v762 = vshrl.u32 %v761, 7
      %v763 = vsub.s32 5, %v762
      %v764 = vrot.slane %v652, %v763
      %v765 = vmul.f32 %v752, %v760
      %v766 = vmul.f32 %v756, %v764
      %767 = vrot.lane.b32.xlu0 %v649, 121
      %v768 = vpop.permute.xlu0 %767
      %769 = vrot.lane.b32.xlu0 %v650, 121
      %v770 = vpop.permute.xlu0 %769
      %vm771 = vcmask 990208
      %v772 = vsel %vm771, %v768, %v770
      %v776 = vsel %vm771, %v770, %v768
      %v777 = vlaneseq
      %v778 = vshrl.u32 %v777, 7
      %v779 = vsub.s32 6, %v778
      %v780 = vrot.slane %v651, %v779
      %v781 = vlaneseq
      %v782 = vshrl.u32 %v781, 7
      %v783 = vsub.s32 6, %v782
      %v784 = vrot.slane %v652, %v783
      %v785 = vmul.f32 %v772, %v780
      %v786 = vmul.f32 %v776, %v784
      %787 = vrot.lane.b32.xlu0 %v649, 120
      %v788 = vpop.permute.xlu0 %787
      %789 = vrot.lane.b32.xlu0 %v650, 120
      %v790 = vpop.permute.xlu0 %789
      %vm791 = vcmask 982016
      %v792 = vsel %vm791, %v788, %v790
      %v796 = vsel %vm791, %v790, %v788
      %v797 = vlaneseq
      %v798 = vshrl.u32 %v797, 7
      %v799 = vsub.s32 7, %v798
      %v800 = vrot.slane %v651, %v799
      %v801 = vlaneseq
      %v802 = vshrl.u32 %v801, 7
      %v803 = vsub.s32 7, %v802
      %v804 = vrot.slane %v652, %v803
      %v805 = vmul.f32 %v792, %v800
      %v806 = vmul.f32 %v796, %v804
      %807 = vrot.lane.b32.xlu0 %v649, 119
      %v808 = vpop.permute.xlu0 %807
      %809 = vrot.lane.b32.xlu0 %v650, 119
      %v810 = vpop.permute.xlu0 %809
      %vm811 = vcmask 973824
      %v812 = vsel %vm811, %v808, %v810
      %v816 = vsel %vm811, %v810, %v808
      %v817 = vlaneseq
      %v818 = vshrl.u32 %v817, 7
      %v819 = vsub.s32 0, %v818
      %v820 = vrot.slane %v653, %v819
      %v821 = vlaneseq
      %v822 = vshrl.u32 %v821, 7
      %v823 = vsub.s32 0, %v822
      %v824 = vrot.slane %v654, %v823
      %v825 = vmul.f32 %v812, %v820
      %v826 = vmul.f32 %v816, %v824
      %v829 = vrot.slane %v695, 4
      %v830 = vrot.slane %v696, 4
      %v835 = vrot.slane %v735, 4
      %v836 = vrot.slane %v736, 4
      %v841 = vrot.slane %v765, 4
      %v842 = vrot.slane %v766, 4
      %v847 = vrot.slane %v805, 4
      %v848 = vrot.slane %v806, 4
      %v851 = vsel %vm594, %v675, %v829
      %v852 = vsel %vm594, %v676, %v830
      %v853 = vsel %vm594, %v715, %v835
      %v854 = vsel %vm594, %v716, %v836
      %v855 = vsel %vm594, %v745, %v841
      %v856 = vsel %vm594, %v746, %v842
      %v857 = vsel %vm594, %v785, %v847
      %v858 = vsel %vm594, %v786, %v848
      %v859 = vld [vmem:[%s5] sm:$0x3]
      %v860 = vpack.c.bf16 %v853, %v851
      %v861 = vpack.c.bf16 %v854, %v852
      %v862 = vpack.c.bf16 %v857, %v855
      %v863 = vpack.c.bf16 %v858, %v856
      %v864 = vpack.c.bf16 %v825, %v825
      %v865 = vpack.c.bf16 %v826, %v826
      %v866 = vld [vmem:[%s6] sm:$0xf]
      %868 = vset.pattern.permute.xlu0 0
      %869 = vperm.xlu0 %868, %v866
      %v870 = vpop.permute.xlu0 %869
      %vm872 = vcmask 293888
      %v874 = vsel %vm872, %v859, 0
      %vm876 = vcmask 1041408
      %v878 = vsel %vm876, %v864, 0
      %v881 = vsel %vm876, %v865, 0
      %883 = vmatprep.subr.bf16.mxu0 %v861
      %884 = vmatpush1.bf16.msra.mxu0 %v860
      %885 = vmatprep.subr.bf16.mxu0 %v863
      %886 = vmatpush1.bf16.msra.mxu0 %v862
      %887 = vmatprep.subr.bf16.mxu0 %v881
      %888 = vmatpush1.bf16.msra.mxu0 %v878
      %889 = vmatprep.subr.bf16.mxu0 0
      %890 = vmatpush1.bf16.msra.mxu0 0
      %891 = vmatprep.subr.bf16.mxu0 0
      %892 = vmatpush1.bf16.msra.mxu0 0
      %893 = vmatprep.subr.bf16.mxu0 0
      %894 = vmatpush1.bf16.msra.mxu0 0
      %895 = vmatprep.subr.bf16.mxu0 0
      %896 = vmatpush1.bf16.msra.mxu0 0
      %897 = vmatprep.subr.bf16.mxu0 0
      %898 = vmatpush1.bf16.msra.mxu0 0
      %899 = vmatprep.subr.bf16.mxu0 0
      %900 = vmatpush1.bf16.msra.mxu0 0
      %901 = vmatprep.subr.bf16.mxu0 0
      %902 = vmatpush1.bf16.msra.mxu0 0
      %903 = vmatprep.subr.bf16.mxu0 0
      %904 = vmatpush1.bf16.msra.mxu0 0
      %905 = vmatprep.subr.bf16.mxu0 0
      %906 = vmatpush1.bf16.msra.mxu0 0
      %907 = vmatprep.subr.bf16.mxu0 0
      %908 = vmatpush1.bf16.msra.mxu0 0
      %909 = vmatprep.subr.bf16.mxu0 0
      %910 = vmatpush1.bf16.msra.mxu0 0
      %911 = vmatprep.subr.bf16.mxu0 0
      %912 = vmatpush1.bf16.msra.mxu0 0
      %913 = vmatprep.subr.bf16.mxu0 0
      %914 = vmatpush1.bf16.msra.mxu0 0
      %915 = vmatprep.mubr.bf16.mxu0 0
      %916 = vmatmul.mubr.bf16.gmra.mrb[0].mxu0 %v874
      %v917 = vpop.f32.mrb[0].mxu0
      %v918 = vadd.f32 %v870, %v917
      %v919 = vpop.f32.mrb[0].mxu0
      %v920 = vadd.f32 %v870, %v919
      %v921 = vpop.f32.mrb[0].mxu0
      %v922 = vpop.f32.mrb[0].mxu0
      %923 = vdwg.mxu0
      %v924 = vmax.f32 %v918, 0.0
      %v925 = vmax.f32 %v920, 0.0
      %v926 = vld [vmem:[%s10] sm:$0x77]
      %928 = vrot.lane.b32.xlu0 %v925, 64
      %v929 = vpop.permute.xlu0 %928
      %932 = vrot.lane.b32.xlu0 %v924, 64
      %v933 = vpop.permute.xlu0 %932
      %v934 = vsel %vm513, %v933, %v929
      %v937 = vsel %vm513, %v929, %v933
      %v939 = vlaneseq
      %v940 = vshrl.u32 %v939, 7
      %v941 = vsub.s32 0, %v940
      %v942 = vrot.slane %v926, %v941
      %v943 = vlaneseq
      %v944 = vshrl.u32 %v943, 7
      %v945 = vsub.s32 4, %v944
      %v946 = vrot.slane %v926, %v945
      %v949 = vlaneseq
      %v950 = vshrl.u32 %v949, 7
      %v951 = vsub.s32 0, %v950
      %v952 = vrot.slane %v942, %v951
      %v953 = vlaneseq
      %v954 = vshrl.u32 %v953, 7
      %v955 = vsub.s32 0, %v954
      %v956 = vrot.slane %v946, %v955
      %v957 = vmul.f32 %v937, %v952
      %v958 = vmul.f32 %v934, %v956
      %v959 = vlaneseq
      %v960 = vshrl.u32 %v959, 7
      %v961 = vsub.s32 1, %v960
      %v962 = vrot.slane %v926, %v961
      %v963 = vlaneseq
      %v964 = vshrl.u32 %v963, 7
      %v965 = vsub.s32 5, %v964
      %v966 = vrot.slane %v926, %v965
      %v969 = vlaneseq
      %v970 = vshrl.u32 %v969, 7
      %v971 = vsub.s32 1, %v970
      %v972 = vrot.slane %v962, %v971
      %v973 = vlaneseq
      %v974 = vshrl.u32 %v973, 7
      %v975 = vsub.s32 1, %v974
      %v976 = vrot.slane %v966, %v975
      %v977 = vmul.f32 %v924, %v972
      %v978 = vmul.f32 %v925, %v976
      %v979 = vlaneseq
      %v980 = vshrl.u32 %v979, 7
      %v981 = vsub.s32 2, %v980
      %v982 = vrot.slane %v926, %v981
      %v983 = vlaneseq
      %v984 = vshrl.u32 %v983, 7
      %v985 = vsub.s32 6, %v984
      %v986 = vrot.slane %v926, %v985
      %v989 = vlaneseq
      %v990 = vshrl.u32 %v989, 7
      %v991 = vsub.s32 2, %v990
      %v992 = vrot.slane %v982, %v991
      %v993 = vlaneseq
      %v994 = vshrl.u32 %v993, 7
      %v995 = vsub.s32 2, %v994
      %v996 = vrot.slane %v986, %v995
      %v997 = vmul.f32 %v934, %v992
      %v998 = vmul.f32 %v937, %v996
      %v1001 = vrot.slane %v977, 4
      %v1002 = vrot.slane %v978, 4
      %v1005 = vsel %vm594, %v957, %v1001
      %v1006 = vsel %vm594, %v958, %v1002
      %v1007 = vld [vmem:[%s8] sm:$0xf]
      %v1008 = vld [vmem:[%s8 + $0x4] sm:$0xf]
      %v1009 = vpack.c.bf16 %v997, %v1005
      %v1010 = vpack.c.bf16 %v998, %v1006
      %v1011 = vld [vmem:[%s9] sm:$0xff]
      %v1012 = vld [vmem:[%s9 + $0x8] sm:$0xff]
      %1014 = vset.pattern.permute.xlu0 0
      %1015 = vperm.xlu0 %1014, %v1011
      %v1016 = vpop.permute.xlu0 %1015
      %1019 = vset.pattern.permute.xlu0 0
      %1020 = vperm.xlu0 %1019, %v1012
      %v1021 = vpop.permute.xlu0 %1020
      %v1025 = vunpack.c.l.b16 %v1007
      %v1026 = vunpack.c.l.b16 %v1008
      %v1027 = vpack.c.b16 %v1026, %v1025
      %vm1028 = vcmask 97280
      %v1030 = vsel %vm1028, %v1027, 0
      %vm1032 = vcmask 1045504
      %v1034 = vsel %vm1032, %v1009, 0
      %v1037 = vsel %vm1032, %v1010, 0
      %1039 = vmatprep.subr.bf16.mxu0 %v1037
      %1040 = vmatpush1.bf16.msra.mxu0 %v1034
      %1041 = vmatprep.subr.bf16.mxu0 0
      %1042 = vmatpush1.bf16.msra.mxu0 0
      %1043 = vmatprep.subr.bf16.mxu0 0
      %1044 = vmatpush1.bf16.msra.mxu0 0
      %1045 = vmatprep.subr.bf16.mxu0 0
      %1046 = vmatpush1.bf16.msra.mxu0 0
      %1047 = vmatprep.subr.bf16.mxu0 0
      %1048 = vmatpush1.bf16.msra.mxu0 0
      %1049 = vmatprep.subr.bf16.mxu0 0
      %1050 = vmatpush1.bf16.msra.mxu0 0
      %1051 = vmatprep.subr.bf16.mxu0 0
      %1052 = vmatpush1.bf16.msra.mxu0 0
      %1053 = vmatprep.subr.bf16.mxu0 0
      %1054 = vmatpush1.bf16.msra.mxu0 0
      %1055 = vmatprep.subr.bf16.mxu0 0
      %1056 = vmatpush1.bf16.msra.mxu0 0
      %1057 = vmatprep.subr.bf16.mxu0 0
      %1058 = vmatpush1.bf16.msra.mxu0 0
      %1059 = vmatprep.subr.bf16.mxu0 0
      %1060 = vmatpush1.bf16.msra.mxu0 0
      %1061 = vmatprep.subr.bf16.mxu0 0
      %1062 = vmatpush1.bf16.msra.mxu0 0
      %1063 = vmatprep.subr.bf16.mxu0 0
      %1064 = vmatpush1.bf16.msra.mxu0 0
      %1065 = vmatprep.subr.bf16.mxu0 0
      %1066 = vmatpush1.bf16.msra.mxu0 0
      %1067 = vmatprep.subr.bf16.mxu0 0
      %1068 = vmatpush1.bf16.msra.mxu0 0
      %1069 = vmatprep.subr.bf16.mxu0 0
      %1070 = vmatpush1.bf16.msra.mxu0 0
      %1071 = vmatprep.mubr.bf16.mxu0 0
      %1072 = vmatmul.mubr.bf16.gmra.mrb[0].mxu0 %v1030
      %v1073 = vpop.f32.mrb[0].mxu0
      %v1074 = vadd.f32 %v1016, %v1073
      %v1075 = vpop.f32.mrb[0].mxu0
      %v1076 = vadd.f32 %v1016, %v1075
      %v1077 = vpop.f32.mrb[0].mxu0
      %v1078 = vadd.f32 %v1021, %v1077
      %v1079 = vpop.f32.mrb[0].mxu0
      %v1080 = vadd.f32 %v1021, %v1079
      %1081 = vdwg.mxu0
      %v1082 = vld [vmem:[%s11] sm:$0xf]
      %v1083 = vld [vmem:[%s11 + $0x4] sm:$0xf]
      %v1084 = vunpack.c.l.bf16 %v1082
      %v1085 = vunpack.c.l.bf16 %v1083
      %v1086 = vld [vmem:[%s12] sm:$0xff]
      %v1087 = vld [vmem:[%s12 + $0x8] sm:$0xff]
      %1089 = vset.pattern.permute.xlu0 0
      %1090 = vperm.xlu0 %1089, %v1086
      %v1091 = vpop.permute.xlu0 %1090
      %1094 = vset.pattern.permute.xlu0 0
      %1095 = vperm.xlu0 %1094, %v1087
      %v1096 = vpop.permute.xlu0 %1095
      %v1099 = vsel %vm682, %v1084, 0
      %v1102 = vsel %vm682, %v1085, 0
      %1104 = vmatprep.subr.mxu0 %v504
      %1105 = vmatpush1.msra.mxu0 %v503
      %1106 = vmatprep.subr.mxu0 0.0
      %1107 = vmatpush1.msra.mxu0 0.0
      %1108 = vmatprep.subr.mxu0 0.0
      %1109 = vmatpush1.msra.mxu0 0.0
      %1110 = vmatprep.subr.mxu0 0.0
      %1111 = vmatpush1.msra.mxu0 0.0
      %1112 = vmatprep.subr.mxu0 0.0
      %1113 = vmatpush1.msra.mxu0 0.0
      %1114 = vmatprep.subr.mxu0 0.0
      %1115 = vmatpush1.msra.mxu0 0.0
      %1116 = vmatprep.subr.mxu0 0.0
      %1117 = vmatpush1.msra.mxu0 0.0
      %1118 = vmatprep.subr.mxu0 0.0
      %1119 = vmatpush1.msra.mxu0 0.0
      %1120 = vmatprep.subr.mxu0 0.0
      %1121 = vmatpush1.msra.mxu0 0.0
      %1122 = vmatprep.subr.mxu0 0.0
      %1123 = vmatpush1.msra.mxu0 0.0
      %1124 = vmatprep.subr.mxu0 0.0
      %1125 = vmatpush1.msra.mxu0 0.0
      %1126 = vmatprep.subr.mxu0 0.0
      %1127 = vmatpush1.msra.mxu0 0.0
      %1128 = vmatprep.subr.mxu0 0.0
      %1129 = vmatpush1.msra.mxu0 0.0
      %1130 = vmatprep.subr.mxu0 0.0
      %1131 = vmatpush1.msra.mxu0 0.0
      %1132 = vmatprep.subr.mxu0 0.0
      %1133 = vmatpush1.msra.mxu0 0.0
      %1134 = vmatprep.subr.mxu0 0.0
      %1135 = vmatpush1.msra.mxu0 0.0
      %1136 = vmatprep.subr.mxu0 0.0
      %1137 = vmatpush1.msra.mxu0 0.0
      %1138 = vmatprep.subr.mxu0 0.0
      %1139 = vmatpush1.msra.mxu0 0.0
      %1140 = vmatprep.subr.mxu0 0.0
      %1141 = vmatpush1.msra.mxu0 0.0
      %1142 = vmatprep.subr.mxu0 0.0
      %1143 = vmatpush1.msra.mxu0 0.0
      %1144 = vmatprep.subr.mxu0 0.0
      %1145 = vmatpush1.msra.mxu0 0.0
      %1146 = vmatprep.subr.mxu0 0.0
      %1147 = vmatpush1.msra.mxu0 0.0
      %1148 = vmatprep.subr.mxu0 0.0
      %1149 = vmatpush1.msra.mxu0 0.0
      %1150 = vmatprep.subr.mxu0 0.0
      %1151 = vmatpush1.msra.mxu0 0.0
      %1152 = vmatprep.subr.mxu0 0.0
      %1153 = vmatpush1.msra.mxu0 0.0
      %1154 = vmatprep.subr.mxu0 0.0
      %1155 = vmatpush1.msra.mxu0 0.0
      %1156 = vmatprep.subr.mxu0 0.0
      %1157 = vmatpush1.msra.mxu0 0.0
      %1158 = vmatprep.subr.mxu0 0.0
      %1159 = vmatpush1.msra.mxu0 0.0
      %1160 = vmatprep.subr.mxu0 0.0
      %1161 = vmatpush1.msra.mxu0 0.0
      %1162 = vmatprep.subr.mxu0 0.0
      %1163 = vmatpush1.msra.mxu0 0.0
      %1164 = vmatprep.subr.mxu0 0.0
      %1165 = vmatpush1.msra.mxu0 0.0
      %1166 = vmatprep.subr.mxu0 0.0
      %1167 = vmatpush1.msra.mxu0 0.0
      %1168 = vmatprep.mubr.f32.mxu0 0.0
      %1169 = vmatmul.mubr.f32.gmra.mrb[0].mxu0 %v1099
      %v1170 = vpop.f32.mrb[0].mxu0
      %v1171 = vadd.f32 %v1091, %v1170
      %v1172 = vpop.f32.mrb[0].mxu0
      %v1173 = vadd.f32 %v1091, %v1172
      %1174 = vmatprep.mubr.f32.mxu0 0.0
      %1175 = vmatmul.mubr.f32.gmra.mrb[0].mxu0 %v1102
      %v1176 = vpop.f32.mrb[0].mxu0
      %v1177 = vadd.f32 %v1096, %v1176
      %v1178 = vpop.f32.mrb[0].mxu0
      %v1179 = vadd.f32 %v1096, %v1178
      %1180 = vdwg.mxu0
      %v1181 = vadd.f32 %v1074, %v1171
      %v1182 = vadd.f32 %v1076, %v1173
      %v1183 = vadd.f32 %v1078, %v1177
      %v1184 = vadd.f32 %v1080, %v1179
      %v1185 = vmax.f32 %v1181, 0.0
      %v1186 = vmax.f32 %v1182, 0.0
      %v1187 = vmax.f32 %v1183, 0.0
      %v1188 = vmax.f32 %v1184, 0.0
      %1189 = vst [vmem:[%s495] sm:$0xff] %v1185
      %1190 = vst [vmem:[%s495 + $0x8] sm:$0xff] %v1186
      %1191 = vst [vmem:[%s495 + $0x10] sm:$0xff] %v1187
      %1192 = vst [vmem:[%s495 + $0x18] sm:$0xff] %v1188
      %v1193 = vcombine.low %v924, %v925
      %1195 = vst [vmem:[%s500] sm:$0xff] %v1193
      %p1196 = scmp.lt.s32.totalorder %s26, 1
      %s1197 = scalar_select %p1196, %s26, 1
      %s1198 = smul.addr %s1197, 4
      %s1199 = smul.addr %s1198, 8
      %s1200 = scalar_lea.vmem %s13, %s1199
      %p1201 = scmp.lt.s32.totalorder %s26, 1
      %s1202 = scalar_select %p1201, %s26, 1
      %s1203 = smul.addr %s1202, 2
      %s1204 = smul.addr %s1203, 4
      %s1205 = scalar_lea.vmem %s14, %s1204
      // Predicated region
      $region73: #{_lambda_.1} parent=71 // pred_check
        %p1206 = pneg %p327
      $region74: #{_lambda_.1} parent=71 // pred_check_branch
        %1208 = sbr.rel (%p1206) target = $region76
      $region75: #{_lambda_.1} parent=71 // pred_region
        _
      $region76: #{_lambda_.1} parent=71 // pred_fallthru
        _
      // Predicated region
      $region77: #{_lambda_.1} parent=71 // pred_check
        %p1209 = pneg %p353
      $region78: #{_lambda_.1} parent=71 // pred_check_branch
        %1211 = sbr.rel (%p1209) target = $region80
      $region79: #{_lambda_.1} parent=71 // pred_region
        _
      $region80: #{_lambda_.1} parent=71 // pred_fallthru
        _
    $region72: #{_lambda_.1} parent=5 // pred_fallthru
      _
    %p1212 = scmp.le.s32.totalorder 2, %s21
    // Predicated region
    $region81: #{_lambda_.1} parent=5 // pred_check
      %p1213 = pneg %p1212
    $region82: #{_lambda_.1} parent=5 // pred_check_branch
      %1215 = sbr.rel (%p1213) target = $region84
    $region83: #{_lambda_.1} parent=5 // pred_region
      %s1216 = ssub.s32 %s21, 2
      // Predicated region
      $region85: #{_lambda_.1} parent=83 // pred_check
        %p1217 = pneg %p333
      $region86: #{_lambda_.1} parent=83 // pred_check_branch
        %1219 = sbr.rel (%p1217) target = $region88
      $region87: #{_lambda_.1} parent=83 // pred_region
        %p1220 = scmp.lt.s32.totalorder %s27, 1
        %s1221 = scalar_select %p1220, %s27, 1
        %s1222 = smul.addr %s1221, 4
        %s1223 = smul.addr %s1222, 8
        %s1224 = scalar_lea.vmem %s13, %s1223
      $region88: #{_lambda_.1} parent=83 // pred_fallthru
        _
      // Predicated region
      $region89: #{_lambda_.1} parent=83 // pred_check
        %p1225 = pneg %p359
      $region90: #{_lambda_.1} parent=83 // pred_check_branch
        %1227 = sbr.rel (%p1225) target = $region92
      $region91: #{_lambda_.1} parent=83 // pred_region
        %p1228 = scmp.lt.s32.totalorder %s27, 1
        %s1229 = scalar_select %p1228, %s27, 1
        %s1230 = smul.addr %s1229, 2
        %s1231 = smul.addr %s1230, 4
        %s1232 = scalar_lea.vmem %s14, %s1231
      $region92: #{_lambda_.1} parent=83 // pred_fallthru
        _
    $region84: #{_lambda_.1} parent=5 // pred_fallthru
      _
  $region6: #{_lambda_.1} parent=0 // loop_footer
    %s25 = sadd.s32 1, %s21
  $region7: #{_lambda_.1} parent=0 // loop_footer_branch
    %20 = sbr.rel target = $region3
  $region8: #{_lambda_.1} parent=0 // loop_exit
    _

</llo_original>
